<compile_context>
chip_gen: v5e
topology: v5e:2x2
jax: 0.10.0
libtpu: 0.0.40
codegen_flags: <defaults>
</compile_context>

<pallas_src>
import functools

import jax
import jax.numpy as jnp
from jax.experimental import pallas as pl
from jax.experimental.pallas import tpu as pltpu


# Conservative VMEM sizing so the same tiling compiles on v5e/v6e (128 MiB
# physical) and v7x (64 MiB per-TC physical).
_VMEM_LIMIT_BYTES = 48 * 1024 * 1024
_SLAB_BUDGET_BYTES = 24 * 1024 * 1024


# ----------------------------------------------------------------------------
# fused kernel: global-avg-pool (per C tile) + meta MLP + myfc head
# grid = (B blocks [parallel], C blocks [reduction])
# ----------------------------------------------------------------------------
def _fused_kernel(
    x_ref,                 # (Bb, Ct, HW) bf16  trunk feature-map tile (native layout)
    xm_ref,                # (Bb, n_meta) f32   meta features
    wm1_ref, bm1_ref,      # meta Linear1 (BN folded)
    wm2_ref, bm2_ref,      # meta Linear2 (BN folded)
    w1f_ref,               # (Ct, out_dim) bf16 myfc Linear1, feat half of concat
    w1m_ref, b1_ref,       # myfc Linear1, meta half + folded bias
    w2_ref, b2_ref,        # myfc Linear2 (BN folded)
    out_ref,               # (Bb, m1) f32
    acc_ref,               # VMEM scratch (Bb, out_dim) f32
    *, inv_hw,
):
    c = pl.program_id(1)

    @pl.when(c == 0)
    def _init():
        acc_ref[...] = jnp.zeros_like(acc_ref)

    # Pool this channel tile over the spatial (lane) axis in f32.  The channel
    # axis is exactly the contraction axis of the first myfc matmul, so the
    # pooled tile folds straight into the accumulator: `feat` never exists in
    # HBM and the matmul is pipelined with the pooling DMAs.
    feat_tile = jnp.sum(x_ref[...].astype(jnp.float32), axis=-1)        # (Bb, Ct)
    acc_ref[...] += jnp.dot(feat_tile, w1f_ref[...].astype(jnp.float32),
                            preferred_element_type=jnp.float32)

    @pl.when(c == pl.num_programs(1) - 1)
    def _finalize():
        def swish(v):
            return v * jax.nn.sigmoid(v)

        # meta branch: Linear+BN(folded)+Swish -> Dropout(id, eval) -> Linear+BN+Swish
        h = swish(jnp.dot(xm_ref[...], wm1_ref[...],
                          preferred_element_type=jnp.float32) + bm1_ref[...])
        h = swish(jnp.dot(h, wm2_ref[...],
                          preferred_element_type=jnp.float32) + bm2_ref[...])

        # myfc layer 1: concat((mean_pool(x), h), dim=1) @ W1 as a split matmul.
        # The feat half was accumulated as a SUM over HW -> scale once here.
        y = swish(acc_ref[...] * inv_hw
                  + jnp.dot(h, w1m_ref[...], preferred_element_type=jnp.float32)
                  + b1_ref[...])
        # myfc layer 2 (+ folded BN) + Swish
        y = swish(jnp.dot(y, w2_ref[...], preferred_element_type=jnp.float32)
                  + b2_ref[...])

        # eval mode: all 5 dropout branches are identity, so the mean of the
        # 5 identical branches equals one evaluation.
        out_ref[...] = y.astype(out_ref.dtype)


# ----------------------------------------------------------------------------
# tiling selection
# ----------------------------------------------------------------------------
def _choose_tiling(B, HW, C, out_dim, n_meta, m1, x_itemsize, w1f_itemsize):
    # Split B across the two v7x TensorCores only when the resulting block
    # keeps sublane alignment (multiple of 8); harmless on single-TC chips.
    nb = 2 if (B % 16 == 0) else 1
    b_blk = B // nb

    # double-buffered small operands + accumulator + output
    fixed = 2 * (b_blk * n_meta * 4 + b_blk * m1 * 4) + b_blk * out_dim * 4
    # bytes per channel (x slab + w1f), double-buffered
    per_c = 2 * (b_blk * HW * x_itemsize + out_dim * w1f_itemsize)

    cands = [t for t in (C, 1024, 512, 256, 128) if t <= C and C % t == 0]
    if not cands:
        cands = [C]                       # full-extent block is always legal
    c_tile = cands[-1]
    for cand in cands:                    # largest first; prefer full C (no C loop)
        if fixed + cand * per_c <= _SLAB_BUDGET_BYTES:
            c_tile = cand
            break
    return nb, b_blk, c_tile


# ----------------------------------------------------------------------------
# wrapper
# ----------------------------------------------------------------------------
@jax.jit
def seresnext_mmc_forward(x_featmap, x_meta, params):
    B, C, H, W = x_featmap.shape
    HW = H * W
    n_meta = x_meta.shape[1]
    out_dim, m1 = params["w2"].shape

    # Free reshape of the native trunk layout; no transpose, no extra cast.
    x3 = x_featmap.reshape(B, C, HW)

    nb, b_blk, c_tile = _choose_tiling(
        B, HW, C, out_dim, n_meta, m1,
        jnp.dtype(x3.dtype).itemsize, jnp.dtype(params["w1f"].dtype).itemsize)
    grid = (nb, C // c_tile)

    def full(shape):
        n = len(shape)
        return pl.BlockSpec(shape, lambda b, c, _n=n: (0,) * _n)

    in_specs = [
        pl.BlockSpec((b_blk, c_tile, HW), lambda b, c: (b, c, 0)),   # x tile (B, C)
        pl.BlockSpec((b_blk, n_meta), lambda b, c: (b, 0)),          # meta (B tile)
        full(params["wm1"].shape), full(params["bm1"].shape),
        full(params["wm2"].shape), full(params["bm2"].shape),
        pl.BlockSpec((c_tile, out_dim), lambda b, c: (c, 0)),        # w1f tile (C)
        full(params["w1m"].shape), full(params["b1"].shape),
        full(params["w2"].shape), full(params["b2"].shape),
    ]

    kernel = functools.partial(_fused_kernel, inv_hw=1.0 / float(HW))

    return pl.pallas_call(
        kernel,
        grid=grid,
        in_specs=in_specs,
        out_specs=pl.BlockSpec((b_blk, m1), lambda b, c: (b, 0)),
        out_shape=jax.ShapeDtypeStruct((B, m1), jnp.float32),
        scratch_shapes=[pltpu.VMEM((b_blk, out_dim), jnp.float32)],
        compiler_params=pltpu.CompilerParams(
            dimension_semantics=("parallel", "arbitrary"),  # B parallel, C reduce
            vmem_limit_bytes=_VMEM_LIMIT_BYTES),
    )(x3, x_meta,
      params["wm1"], params["bm1"], params["wm2"], params["bm2"],
      params["w1f"], params["w1m"], params["b1"],
      params["w2"], params["b2"])


# ----------------------------------------------------------------------------
# parameter construction (deterministic, synthetic) with BN folding
# ----------------------------------------------------------------------------
def _bn_scale_shift(key, dim, eps=1e-5):
    kg, kb, km, kv = jax.random.split(key, 4)
    gamma = 1.0 + 0.1 * jax.random.normal(kg, (1, dim), jnp.float32)
    beta = 0.1 * jax.random.normal(kb, (1, dim), jnp.float32)
    mean = 0.1 * jax.random.normal(km, (1, dim), jnp.float32)
    var = jnp.abs(jax.random.normal(kv, (1, dim), jnp.float32)) + 0.5
    scale = gamma * jax.lax.rsqrt(var + eps)
    shift = beta - mean * scale
    return scale, shift


def make_params(key, c_feat, n_meta, n_meta_dim):
    m0, m1 = n_meta_dim              # [512, 128] in the real model
    out_dim = m0                     # myfc's BN1d(n_meta_dim[0]) forces out_dim == n_meta_dim[0]
    keys = jax.random.split(key, 8)

    def lin(k, fan_in, fan_out):
        w = jax.random.normal(k, (fan_in, fan_out), jnp.float32) / jnp.sqrt(fan_in)
        b = 0.01 * jax.random.normal(jax.random.fold_in(k, 1), (1, fan_out), jnp.float32)
        return w, b

    def fold(w, b, s, t):            # Linear followed by eval-mode BatchNorm1d
        return w * s, b * s + t

    wm1, bm1 = fold(*lin(keys[0], n_meta, m0), *_bn_scale_shift(keys[1], m0))
    wm2, bm2 = fold(*lin(keys[2], m0, m1), *_bn_scale_shift(keys[3], m1))

    w1_full, b1_raw = lin(keys[4], c_feat + m1, out_dim)
    s1, t1 = _bn_scale_shift(keys[5], out_dim)
    w1_full, b1 = fold(w1_full, b1_raw, s1, t1)
    w1f = w1_full[:c_feat].astype(jnp.bfloat16)   # large weight: bf16 storage/DMA
    w1m = w1_full[c_feat:]                        # small meta half stays f32

    w2, b2 = fold(*lin(keys[6], m0, m1), *_bn_scale_shift(keys[7], m1))

    return dict(wm1=wm1, bm1=bm1, wm2=wm2, bm2=bm2,
                w1f=w1f, w1m=w1m, b1=b1, w2=w2, b2=b2)


# ----------------------------------------------------------------------------
# pure-JAX reference (keeps the literal 5-branch average for spec fidelity)
# ----------------------------------------------------------------------------
def reference_forward(x_featmap, x_meta, p):
    swish = lambda v: v * jax.nn.sigmoid(v)
    feat = jnp.mean(x_featmap.astype(jnp.float32), axis=(2, 3))
    h = swish(x_meta @ p["wm1"] + p["bm1"])
    h = swish(h @ p["wm2"] + p["bm2"])
    x = jnp.concatenate([feat, h], axis=1)
    w1 = jnp.concatenate([p["w1f"].astype(jnp.float32), p["w1m"]], axis=0)
    out = 0.0
    for _ in range(5):               # eval-mode dropout = identity
        y = swish(x @ w1 + p["b1"])
        y = swish(y @ p["w2"] + p["b2"])
        out = out + y
    return out / 5.0


if __name__ == "__main__":
    # small shapes consistent with the module structure
    B, C_FEAT, H, W = 4, 256, 8, 8       # trunk feature map (real model: C=2048, HW=256)
    N_META = 16                          # n_meta_features
    N_META_DIM = [64, 32]                # [512, 128] in the real model

    key = jax.random.PRNGKey(0)
    kx, km, kp = jax.random.split(key, 3)
    # trunk emits bf16 NCHW directly (no wrapper-side transpose/cast pass)
    x_featmap = jax.random.normal(kx, (B, C_FEAT, H, W), jnp.float32).astype(jnp.bfloat16)
    x_meta = jax.random.normal(km, (B, N_META), jnp.float32)
    params = make_params(kp, C_FEAT, N_META, N_META_DIM)

    out = jax.block_until_ready(seresnext_mmc_forward(x_featmap, x_meta, params))
    ref = reference_forward(x_featmap, x_meta, params)

    assert out.shape == (B, N_META_DIM[1]), out.shape
    assert jnp.allclose(out, ref, atol=2e-3, rtol=2e-3), float(jnp.max(jnp.abs(out - ref)))

    print("KERNEL_OK")
</pallas_src>

<mosaic_0001>
module attributes {stable_mosaic.version = 11 : i64} {
  func.func @_fused_kernel(%arg0: i32, %arg1: i32, %arg2: memref<4x256x64xbf16, #tpu.memory_space<vmem>>, %arg3: memref<4x16xf32, #tpu.memory_space<vmem>>, %arg4: memref<16x64xf32, #tpu.memory_space<vmem>>, %arg5: memref<1x64xf32, #tpu.memory_space<vmem>>, %arg6: memref<64x32xf32, #tpu.memory_space<vmem>>, %arg7: memref<1x32xf32, #tpu.memory_space<vmem>>, %arg8: memref<256x64xbf16, #tpu.memory_space<vmem>>, %arg9: memref<32x64xf32, #tpu.memory_space<vmem>>, %arg10: memref<1x64xf32, #tpu.memory_space<vmem>>, %arg11: memref<64x32xf32, #tpu.memory_space<vmem>>, %arg12: memref<1x32xf32, #tpu.memory_space<vmem>>, %arg13: memref<4x32xf32, #tpu.memory_space<vmem>>, %arg14: memref<4x64xf32, #tpu.memory_space<vmem>>) attributes {dimension_semantics = [#tpu.dimension_semantics<parallel>, #tpu.dimension_semantics<arbitrary>], iteration_bounds = array<i64: 1, 1>, scalar_prefetch = 0 : i64, scratch_operands = 1 : i64, tpu.core_type = #tpu.core_type<tc>, window_params = [{transform_indices = @transform_0, window_bounds = array<i64: 4, 256, 64>}, {transform_indices = @transform_1, window_bounds = array<i64: 4, 16>}, {pipeline_mode = #tpu.pipeline_mode<synchronous>, transform_indices = @transform_2, window_bounds = array<i64: 16, 64>}, {pipeline_mode = #tpu.pipeline_mode<synchronous>, transform_indices = @transform_3, window_bounds = array<i64: 1, 64>}, {pipeline_mode = #tpu.pipeline_mode<synchronous>, transform_indices = @transform_4, window_bounds = array<i64: 64, 32>}, {pipeline_mode = #tpu.pipeline_mode<synchronous>, transform_indices = @transform_5, window_bounds = array<i64: 1, 32>}, {transform_indices = @transform_6, window_bounds = array<i64: 256, 64>}, {pipeline_mode = #tpu.pipeline_mode<synchronous>, transform_indices = @transform_7, window_bounds = array<i64: 32, 64>}, {pipeline_mode = #tpu.pipeline_mode<synchronous>, transform_indices = @transform_8, window_bounds = array<i64: 1, 64>}, {pipeline_mode = #tpu.pipeline_mode<synchronous>, transform_indices = @transform_9, window_bounds = array<i64: 64, 32>}, {pipeline_mode = #tpu.pipeline_mode<synchronous>, transform_indices = @transform_10, window_bounds = array<i64: 1, 32>}, {transform_indices = @transform_11, window_bounds = array<i64: 4, 32>}]} {
    %c0_i32 = arith.constant 0 : i32
    %0 = arith.cmpi eq, %arg1, %c0_i32 : i32
    %1 = arith.extui %0 : i1 to i32
    %c0_i32_0 = arith.constant 0 : i32
    %2 = arith.cmpi ne, %1, %c0_i32_0 : i32
    scf.if %2 {
      %cst_12 = arith.constant 0.000000e+00 : f32
      %15 = vector.broadcast %cst_12 : f32 to vector<4x64xf32>
      %c0_13 = arith.constant 0 : index
      %c0_14 = arith.constant 0 : index
      %16 = vector.load %arg14[%c0_13, %c0_14] : memref<4x64xf32, #tpu.memory_space<vmem>>, vector<4x64xf32>
      tpu.vector_store %arg14[%c0_13, %c0_14], %15 {strides = array<i32>} : memref<4x64xf32, #tpu.memory_space<vmem>>, vector<4x64xf32>,
    } else {
    }
    %c0 = arith.constant 0 : index
    %c0_1 = arith.constant 0 : index
    %c0_2 = arith.constant 0 : index
    %3 = vector.load %arg2[%c0, %c0_1, %c0_2] : memref<4x256x64xbf16, #tpu.memory_space<vmem>>, vector<4x256x64xbf16>
    %4 = arith.extf %3 : vector<4x256x64xbf16> to vector<4x256x64xf32>
    %cst = arith.constant dense<0.000000e+00> : vector<4x256xf32>
    %5 = vector.multi_reduction <add>, %4, %cst [2] : vector<4x256x64xf32> to vector<4x256xf32>
    %c0_3 = arith.constant 0 : index
    %c0_4 = arith.constant 0 : index
    %6 = vector.load %arg14[%c0_3, %c0_4] : memref<4x64xf32, #tpu.memory_space<vmem>>, vector<4x64xf32>
    %c0_5 = arith.constant 0 : index
    %c0_6 = arith.constant 0 : index
    %7 = vector.load %arg8[%c0_5, %c0_6] : memref<256x64xbf16, #tpu.memory_space<vmem>>, vector<256x64xbf16>
    %8 = arith.extf %7 : vector<256x64xbf16> to vector<256x64xf32>
    %cst_7 = arith.constant dense<0.000000e+00> : vector<4x64xf32>
    %9 = tpu.matmul %5, %8, %cst_7 {dimension_numbers = #tpu.dot_dimension_numbers<[1], [0], [0], [1], [0, 0, 1, 1], [], []>} : vector<4x256xf32>, vector<256x64xf32>, vector<4x64xf32> -> vector<4x64xf32>
    %10 = arith.addf %6, %9 : vector<4x64xf32>
    %c0_8 = arith.constant 0 : index
    %c0_9 = arith.constant 0 : index
    %11 = vector.load %arg14[%c0_8, %c0_9] : memref<4x64xf32, #tpu.memory_space<vmem>>, vector<4x64xf32>
    tpu.vector_store %arg14[%c0_8, %c0_9], %10 {strides = array<i32>} : memref<4x64xf32, #tpu.memory_space<vmem>>, vector<4x64xf32>,
    %c0_i32_10 = arith.constant 0 : i32
    %12 = arith.cmpi eq, %arg1, %c0_i32_10 : i32
    %13 = arith.extui %12 : i1 to i32
    %c0_i32_11 = arith.constant 0 : i32
    %14 = arith.cmpi ne, %13, %c0_i32_11 : i32
    scf.if %14 {
      %c0_12 = arith.constant 0 : index
      %c0_13 = arith.constant 0 : index
      %15 = vector.load %arg3[%c0_12, %c0_13] : memref<4x16xf32, #tpu.memory_space<vmem>>, vector<4x16xf32>
      %c0_14 = arith.constant 0 : index
      %c0_15 = arith.constant 0 : index
      %16 = vector.load %arg4[%c0_14, %c0_15] : memref<16x64xf32, #tpu.memory_space<vmem>>, vector<16x64xf32>
      %cst_16 = arith.constant dense<0.000000e+00> : vector<4x64xf32>
      %17 = tpu.matmul %15, %16, %cst_16 {dimension_numbers = #tpu.dot_dimension_numbers<[1], [0], [0], [1], [0, 0, 1, 1], [], []>} : vector<4x16xf32>, vector<16x64xf32>, vector<4x64xf32> -> vector<4x64xf32>
      %c0_17 = arith.constant 0 : index
      %c0_18 = arith.constant 0 : index
      %18 = vector.load %arg5[%c0_17, %c0_18] : memref<1x64xf32, #tpu.memory_space<vmem>>, vector<1x64xf32>
      %19 = vector.broadcast %18 : vector<1x64xf32> to vector<4x64xf32>
      %20 = arith.addf %17, %19 : vector<4x64xf32>
      %21 = arith.negf %20 : vector<4x64xf32>
      %22 = math.exp %21 : vector<4x64xf32>
      %cst_19 = arith.constant 1.000000e+00 : f32
      %23 = vector.broadcast %cst_19 : f32 to vector<4x64xf32>
      %24 = arith.addf %23, %22 : vector<4x64xf32>
      %25 = arith.divf %23, %24 : vector<4x64xf32>
      %26 = arith.mulf %20, %25 : vector<4x64xf32>
      %c0_20 = arith.constant 0 : index
      %c0_21 = arith.constant 0 : index
      %27 = vector.load %arg6[%c0_20, %c0_21] : memref<64x32xf32, #tpu.memory_space<vmem>>, vector<64x32xf32>
      %cst_22 = arith.constant dense<0.000000e+00> : vector<4x32xf32>
      %28 = tpu.matmul %26, %27, %cst_22 {dimension_numbers = #tpu.dot_dimension_numbers<[1], [0], [0], [1], [0, 0, 1, 1], [], []>} : vector<4x64xf32>, vector<64x32xf32>, vector<4x32xf32> -> vector<4x32xf32>
      %c0_23 = arith.constant 0 : index
      %c0_24 = arith.constant 0 : index
      %29 = vector.load %arg7[%c0_23, %c0_24] : memref<1x32xf32, #tpu.memory_space<vmem>>, vector<1x32xf32>
      %30 = vector.broadcast %29 : vector<1x32xf32> to vector<4x32xf32>
      %31 = arith.addf %28, %30 : vector<4x32xf32>
      %32 = arith.negf %31 : vector<4x32xf32>
      %33 = math.exp %32 : vector<4x32xf32>
      %cst_25 = arith.constant 1.000000e+00 : f32
      %34 = vector.broadcast %cst_25 : f32 to vector<4x32xf32>
      %35 = arith.addf %34, %33 : vector<4x32xf32>
      %36 = arith.divf %34, %35 : vector<4x32xf32>
      %37 = arith.mulf %31, %36 : vector<4x32xf32>
      %c0_26 = arith.constant 0 : index
      %c0_27 = arith.constant 0 : index
      %38 = vector.load %arg14[%c0_26, %c0_27] : memref<4x64xf32, #tpu.memory_space<vmem>>, vector<4x64xf32>
      %cst_28 = arith.constant 1.562500e-02 : f32
      %39 = vector.broadcast %cst_28 : f32 to vector<4x64xf32>
      %40 = arith.mulf %38, %39 : vector<4x64xf32>
      %c0_29 = arith.constant 0 : index
      %c0_30 = arith.constant 0 : index
      %41 = vector.load %arg9[%c0_29, %c0_30] : memref<32x64xf32, #tpu.memory_space<vmem>>, vector<32x64xf32>
      %cst_31 = arith.constant dense<0.000000e+00> : vector<4x64xf32>
      %42 = tpu.matmul %37, %41, %cst_31 {dimension_numbers = #tpu.dot_dimension_numbers<[1], [0], [0], [1], [0, 0, 1, 1], [], []>} : vector<4x32xf32>, vector<32x64xf32>, vector<4x64xf32> -> vector<4x64xf32>
      %43 = arith.addf %40, %42 : vector<4x64xf32>
      %c0_32 = arith.constant 0 : index
      %c0_33 = arith.constant 0 : index
      %44 = vector.load %arg10[%c0_32, %c0_33] : memref<1x64xf32, #tpu.memory_space<vmem>>, vector<1x64xf32>
      %45 = vector.broadcast %44 : vector<1x64xf32> to vector<4x64xf32>
      %46 = arith.addf %43, %45 : vector<4x64xf32>
      %47 = arith.negf %46 : vector<4x64xf32>
      %48 = math.exp %47 : vector<4x64xf32>
      %cst_34 = arith.constant 1.000000e+00 : f32
      %49 = vector.broadcast %cst_34 : f32 to vector<4x64xf32>
      %50 = arith.addf %49, %48 : vector<4x64xf32>
      %51 = arith.divf %49, %50 : vector<4x64xf32>
      %52 = arith.mulf %46, %51 : vector<4x64xf32>
      %c0_35 = arith.constant 0 : index
      %c0_36 = arith.constant 0 : index
      %53 = vector.load %arg11[%c0_35, %c0_36] : memref<64x32xf32, #tpu.memory_space<vmem>>, vector<64x32xf32>
      %cst_37 = arith.constant dense<0.000000e+00> : vector<4x32xf32>
      %54 = tpu.matmul %52, %53, %cst_37 {dimension_numbers = #tpu.dot_dimension_numbers<[1], [0], [0], [1], [0, 0, 1, 1], [], []>} : vector<4x64xf32>, vector<64x32xf32>, vector<4x32xf32> -> vector<4x32xf32>
      %c0_38 = arith.constant 0 : index
      %c0_39 = arith.constant 0 : index
      %55 = vector.load %arg12[%c0_38, %c0_39] : memref<1x32xf32, #tpu.memory_space<vmem>>, vector<1x32xf32>
      %56 = vector.broadcast %55 : vector<1x32xf32> to vector<4x32xf32>
      %57 = arith.addf %54, %56 : vector<4x32xf32>
      %58 = arith.negf %57 : vector<4x32xf32>
      %59 = math.exp %58 : vector<4x32xf32>
      %cst_40 = arith.constant 1.000000e+00 : f32
      %60 = vector.broadcast %cst_40 : f32 to vector<4x32xf32>
      %61 = arith.addf %60, %59 : vector<4x32xf32>
      %62 = arith.divf %60, %61 : vector<4x32xf32>
      %63 = arith.mulf %57, %62 : vector<4x32xf32>
      %c0_41 = arith.constant 0 : index
      %c0_42 = arith.constant 0 : index
      %64 = vector.load %arg13[%c0_41, %c0_42] : memref<4x32xf32, #tpu.memory_space<vmem>>, vector<4x32xf32>
      tpu.vector_store %arg13[%c0_41, %c0_42], %63 {strides = array<i32>} : memref<4x32xf32, #tpu.memory_space<vmem>>, vector<4x32xf32>,
    } else {
    }
    return
  }
  func.func @transform_0(%arg0: i32, %arg1: i32) -> (i32, i32, i32) {
    %c0_i32 = arith.constant 0 : i32
    %c0_i32_0 = arith.constant 0 : i32
    return %arg0, %arg1, %c0_i32 : i32, i32, i32
  }
  func.func @transform_1(%arg0: i32, %arg1: i32) -> (i32, i32) {
    %c0_i32 = arith.constant 0 : i32
    %c0_i32_0 = arith.constant 0 : i32
    return %arg0, %c0_i32 : i32, i32
  }
  func.func @transform_2(%arg0: i32, %arg1: i32) -> (i32, i32) {
    %c0_i32 = arith.constant 0 : i32
    %c0_i32_0 = arith.constant 0 : i32
    %c0_i32_1 = arith.constant 0 : i32
    return %c0_i32, %c0_i32_0 : i32, i32
  }
  func.func @transform_3(%arg0: i32, %arg1: i32) -> (i32, i32) {
    %c0_i32 = arith.constant 0 : i32
    %c0_i32_0 = arith.constant 0 : i32
    %c0_i32_1 = arith.constant 0 : i32
    return %c0_i32, %c0_i32_0 : i32, i32
  }
  func.func @transform_4(%arg0: i32, %arg1: i32) -> (i32, i32) {
    %c0_i32 = arith.constant 0 : i32
    %c0_i32_0 = arith.constant 0 : i32
    %c0_i32_1 = arith.constant 0 : i32
    return %c0_i32, %c0_i32_0 : i32, i32
  }
  func.func @transform_5(%arg0: i32, %arg1: i32) -> (i32, i32) {
    %c0_i32 = arith.constant 0 : i32
    %c0_i32_0 = arith.constant 0 : i32
    %c0_i32_1 = arith.constant 0 : i32
    return %c0_i32, %c0_i32_0 : i32, i32
  }
  func.func @transform_6(%arg0: i32, %arg1: i32) -> (i32, i32) {
    %c0_i32 = arith.constant 0 : i32
    %c0_i32_0 = arith.constant 0 : i32
    return %arg1, %c0_i32 : i32, i32
  }
  func.func @transform_7(%arg0: i32, %arg1: i32) -> (i32, i32) {
    %c0_i32 = arith.constant 0 : i32
    %c0_i32_0 = arith.constant 0 : i32
    %c0_i32_1 = arith.constant 0 : i32
    return %c0_i32, %c0_i32_0 : i32, i32
  }
  func.func @transform_8(%arg0: i32, %arg1: i32) -> (i32, i32) {
    %c0_i32 = arith.constant 0 : i32
    %c0_i32_0 = arith.constant 0 : i32
    %c0_i32_1 = arith.constant 0 : i32
    return %c0_i32, %c0_i32_0 : i32, i32
  }
  func.func @transform_9(%arg0: i32, %arg1: i32) -> (i32, i32) {
    %c0_i32 = arith.constant 0 : i32
    %c0_i32_0 = arith.constant 0 : i32
    %c0_i32_1 = arith.constant 0 : i32
    return %c0_i32, %c0_i32_0 : i32, i32
  }
  func.func @transform_10(%arg0: i32, %arg1: i32) -> (i32, i32) {
    %c0_i32 = arith.constant 0 : i32
    %c0_i32_0 = arith.constant 0 : i32
    %c0_i32_1 = arith.constant 0 : i32
    return %c0_i32, %c0_i32_0 : i32, i32
  }
  func.func @transform_11(%arg0: i32, %arg1: i32) -> (i32, i32) {
    %c0_i32 = arith.constant 0 : i32
    %c0_i32_0 = arith.constant 0 : i32
    return %arg0, %c0_i32 : i32, i32
  }
}

</mosaic_0001>

<llo_original>
// kernel: seresnext_mmc_forward.1
$region0: #{seresnext_mmc_forward.1}
  #allocation0 [shape = 'u32[]', space=smem, size = 0x4, offset = 0x4, fixed_abs, tag = 'smem constant byte address 0x4 - core index']
  #allocation1 [shape = 'u32[72,128]{1,0:T(1,128)}', space=vmem, size = 0x9000, scoped, tag = 'internal scratch']
  #allocation2 [shape = 'f32[4,64]{1,0:T(4,128)}', space=vmem, size = 0x800, scoped, tag = 'scratch operand']
  %s0 = inlined_call_operand.vmem [shape: bf16[4,256,64], index: 0, kind: input, shape index: {}]
  %s1 = inlined_call_operand.vmem [shape: f32[4,16], index: 1, kind: input, shape index: {}]
  %s2 = inlined_call_operand.vmem [shape: f32[16,64], index: 2, kind: input, shape index: {}]
  %s3 = inlined_call_operand.vmem [shape: f32[1,64], index: 3, kind: input, shape index: {}]
  %s4 = inlined_call_operand.vmem [shape: f32[64,32], index: 4, kind: input, shape index: {}]
  %s5 = inlined_call_operand.vmem [shape: f32[1,32], index: 5, kind: input, shape index: {}]
  %s6 = inlined_call_operand.vmem [shape: bf16[256,64], index: 6, kind: input, shape index: {}]
  %s7 = inlined_call_operand.vmem [shape: f32[32,64], index: 7, kind: input, shape index: {}]
  %s8 = inlined_call_operand.vmem [shape: f32[1,64], index: 8, kind: input, shape index: {}]
  %s9 = inlined_call_operand.vmem [shape: f32[64,32], index: 9, kind: input, shape index: {}]
  %s10 = inlined_call_operand.vmem [shape: f32[1,32], index: 10, kind: input, shape index: {}]
  %s11 = inlined_call_operand.hbm [shape: f32[4,32], index: 11, kind: output, shape index: {}]
  %s12 = sld [smem:[#allocation0]]
  $region62: #{seresnext_mmc_forward.1} parent=0
    _
  %s14 = ssub.s32 1, %s12
  %s15 = scalar_select 0, %s14, %s12
  $region1: #{seresnext_mmc_forward.1} parent=0
    #allocation3 [shape = 'u8[2048]{0}', space=vmem, size = 0x800, scoped, tag = 'output window, operand 0, single buffered']
    #allocation4 [shape = 's32[1]{0}', space=sflag, size = 0x4, scoped, tag = 'scoped memory for seresnext_mmc_forward.1']
    %16 = vsyncpa [#allocation4], 0
    // Predicated region
    $region2: #{seresnext_mmc_forward.1} parent=1 // pred_check
      _
    $region3: #{seresnext_mmc_forward.1} parent=1 // pred_check_branch
      %18 = sbr.rel (0) target = $region5
    $region4: #{seresnext_mmc_forward.1} parent=1 // pred_region
      _
    $region5: #{seresnext_mmc_forward.1} parent=1 // pred_fallthru
      _
    // Predicated region
    $region6: #{seresnext_mmc_forward.1} parent=1 // pred_check
      _
    $region7: #{seresnext_mmc_forward.1} parent=1 // pred_check_branch
      %20 = sbr.rel (0) target = $region9
    $region8: #{seresnext_mmc_forward.1} parent=1 // pred_region
      _
    $region9: #{seresnext_mmc_forward.1} parent=1 // pred_fallthru
      _
    // Predicated region
    $region10: #{seresnext_mmc_forward.1} parent=1 // pred_check
      _
    $region11: #{seresnext_mmc_forward.1} parent=1 // pred_check_branch
      %22 = sbr.rel (0) target = $region13
    $region12: #{seresnext_mmc_forward.1} parent=1 // pred_region
      _
    $region13: #{seresnext_mmc_forward.1} parent=1 // pred_fallthru
      _
    // Predicated region
    $region14: #{seresnext_mmc_forward.1} parent=1 // pred_check
      _
    $region15: #{seresnext_mmc_forward.1} parent=1 // pred_check_branch
      %24 = sbr.rel (0) target = $region17
    $region16: #{seresnext_mmc_forward.1} parent=1 // pred_region
      _
    $region17: #{seresnext_mmc_forward.1} parent=1 // pred_fallthru
      _
    // Predicated region
    $region18: #{seresnext_mmc_forward.1} parent=1 // pred_check
      _
    $region19: #{seresnext_mmc_forward.1} parent=1 // pred_check_branch
      %26 = sbr.rel (0) target = $region21
    $region20: #{seresnext_mmc_forward.1} parent=1 // pred_region
      _
    $region21: #{seresnext_mmc_forward.1} parent=1 // pred_fallthru
      _
    // Predicated region
    $region22: #{seresnext_mmc_forward.1} parent=1 // pred_check
      _
    $region23: #{seresnext_mmc_forward.1} parent=1 // pred_check_branch
      %28 = sbr.rel (0) target = $region25
    $region24: #{seresnext_mmc_forward.1} parent=1 // pred_region
      _
    $region25: #{seresnext_mmc_forward.1} parent=1 // pred_fallthru
      _
    // Predicated region
    $region26: #{seresnext_mmc_forward.1} parent=1 // pred_check
      _
    $region27: #{seresnext_mmc_forward.1} parent=1 // pred_check_branch
      %30 = sbr.rel (0) target = $region29
    $region28: #{seresnext_mmc_forward.1} parent=1 // pred_region
      _
    $region29: #{seresnext_mmc_forward.1} parent=1 // pred_fallthru
      _
    // Predicated region
    $region30: #{seresnext_mmc_forward.1} parent=1 // pred_check
      _
    $region31: #{seresnext_mmc_forward.1} parent=1 // pred_check_branch
      %32 = sbr.rel (0) target = $region33
    $region32: #{seresnext_mmc_forward.1} parent=1 // pred_region
      _
    $region33: #{seresnext_mmc_forward.1} parent=1 // pred_fallthru
      _
    // Predicated region
    $region34: #{seresnext_mmc_forward.1} parent=1 // pred_check
      _
    $region35: #{seresnext_mmc_forward.1} parent=1 // pred_check_branch
      %34 = sbr.rel (0) target = $region37
    $region36: #{seresnext_mmc_forward.1} parent=1 // pred_region
      _
    $region37: #{seresnext_mmc_forward.1} parent=1 // pred_fallthru
      _
    // Predicated region
    $region38: #{seresnext_mmc_forward.1} parent=1 // pred_check
      _
    $region39: #{seresnext_mmc_forward.1} parent=1 // pred_check_branch
      %36 = sbr.rel (0) target = $region41
    $region40: #{seresnext_mmc_forward.1} parent=1 // pred_region
      _
    $region41: #{seresnext_mmc_forward.1} parent=1 // pred_fallthru
      _
    // Predicated region
    $region42: #{seresnext_mmc_forward.1} parent=1 // pred_check
      _
    $region43: #{seresnext_mmc_forward.1} parent=1 // pred_check_branch
      %38 = sbr.rel (0) target = $region45
    $region44: #{seresnext_mmc_forward.1} parent=1 // pred_region
      _
    $region45: #{seresnext_mmc_forward.1} parent=1 // pred_fallthru
      _
    %p39 = scmp.eq.s32.totalorder 0, 0
    // Predicated region
    $region46: #{seresnext_mmc_forward.1} parent=1 // pred_check
      %p40 = pneg %p39
    $region47: #{seresnext_mmc_forward.1} parent=1 // pred_check_branch
      %42 = sbr.rel (%p40) target = $region49
    $region48: #{seresnext_mmc_forward.1} parent=1 // pred_region
      %vm43 = vcmask 519168
      %44 = vst.msk [vmem:[#allocation2] sm:$0xf] %vm43, 0.0
    $region49: #{seresnext_mmc_forward.1} parent=1 // pred_fallthru
      _
    %v45 = vld [vmem:[%s0] sm:$0xf]
    %v46 = vld [vmem:[%s0 + $0x4] sm:$0xf]
    %v47 = vld [vmem:[%s0 + $0x8] sm:$0xf]
    %v48 = vld [vmem:[%s0 + $0xc] sm:$0xf]
    %v49 = vld [vmem:[%s0 + $0x10] sm:$0xf]
    %v50 = vld [vmem:[%s0 + $0x14] sm:$0xf]
    %v51 = vld [vmem:[%s0 + $0x18] sm:$0xf]
    %v52 = vld [vmem:[%s0 + $0x1c] sm:$0xf]
    %v53 = vld [vmem:[%s0 + $0x20] sm:$0xf]
    %v54 = vld [vmem:[%s0 + $0x24] sm:$0xf]
    %v55 = vld [vmem:[%s0 + $0x28] sm:$0xf]
    %v56 = vld [vmem:[%s0 + $0x2c] sm:$0xf]
    %v57 = vld [vmem:[%s0 + $0x30] sm:$0xf]
    %v58 = vld [vmem:[%s0 + $0x34] sm:$0xf]
    %v59 = vld [vmem:[%s0 + $0x38] sm:$0xf]
    %v60 = vld [vmem:[%s0 + $0x3c] sm:$0xf]
    %v61 = vld [vmem:[%s0 + $0x40] sm:$0xf]
    %v62 = vld [vmem:[%s0 + $0x44] sm:$0xf]
    %v63 = vld [vmem:[%s0 + $0x48] sm:$0xf]
    %v64 = vld [vmem:[%s0 + $0x4c] sm:$0xf]
    %v65 = vld [vmem:[%s0 + $0x50] sm:$0xf]
    %v66 = vld [vmem:[%s0 + $0x54] sm:$0xf]
    %v67 = vld [vmem:[%s0 + $0x58] sm:$0xf]
    %v68 = vld [vmem:[%s0 + $0x5c] sm:$0xf]
    %v69 = vld [vmem:[%s0 + $0x60] sm:$0xf]
    %v70 = vld [vmem:[%s0 + $0x64] sm:$0xf]
    %v71 = vld [vmem:[%s0 + $0x68] sm:$0xf]
    %v72 = vld [vmem:[%s0 + $0x6c] sm:$0xf]
    %v73 = vld [vmem:[%s0 + $0x70] sm:$0xf]
    %v74 = vld [vmem:[%s0 + $0x74] sm:$0xf]
    %v75 = vld [vmem:[%s0 + $0x78] sm:$0xf]
    %v76 = vld [vmem:[%s0 + $0x7c] sm:$0xf]
    %v77 = vld [vmem:[%s0 + $0x80] sm:$0xf]
    %v78 = vld [vmem:[%s0 + $0x84] sm:$0xf]
    %v79 = vld [vmem:[%s0 + $0x88] sm:$0xf]
    %v80 = vld [vmem:[%s0 + $0x8c] sm:$0xf]
    %v81 = vld [vmem:[%s0 + $0x90] sm:$0xf]
    %v82 = vld [vmem:[%s0 + $0x94] sm:$0xf]
    %v83 = vld [vmem:[%s0 + $0x98] sm:$0xf]
    %v84 = vld [vmem:[%s0 + $0x9c] sm:$0xf]
    %v85 = vld [vmem:[%s0 + $0xa0] sm:$0xf]
    %v86 = vld [vmem:[%s0 + $0xa4] sm:$0xf]
    %v87 = vld [vmem:[%s0 + $0xa8] sm:$0xf]
    %v88 = vld [vmem:[%s0 + $0xac] sm:$0xf]
    %v89 = vld [vmem:[%s0 + $0xb0] sm:$0xf]
    %v90 = vld [vmem:[%s0 + $0xb4] sm:$0xf]
    %v91 = vld [vmem:[%s0 + $0xb8] sm:$0xf]
    %v92 = vld [vmem:[%s0 + $0xbc] sm:$0xf]
    %v93 = vld [vmem:[%s0 + $0xc0] sm:$0xf]
    %v94 = vld [vmem:[%s0 + $0xc4] sm:$0xf]
    %v95 = vld [vmem:[%s0 + $0xc8] sm:$0xf]
    %v96 = vld [vmem:[%s0 + $0xcc] sm:$0xf]
    %v97 = vld [vmem:[%s0 + $0xd0] sm:$0xf]
    %v98 = vld [vmem:[%s0 + $0xd4] sm:$0xf]
    %v99 = vld [vmem:[%s0 + $0xd8] sm:$0xf]
    %v100 = vld [vmem:[%s0 + $0xdc] sm:$0xf]
    %v101 = vld [vmem:[%s0 + $0xe0] sm:$0xf]
    %v102 = vld [vmem:[%s0 + $0xe4] sm:$0xf]
    %v103 = vld [vmem:[%s0 + $0xe8] sm:$0xf]
    %v104 = vld [vmem:[%s0 + $0xec] sm:$0xf]
    %v105 = vld [vmem:[%s0 + $0xf0] sm:$0xf]
    %v106 = vld [vmem:[%s0 + $0xf4] sm:$0xf]
    %v107 = vld [vmem:[%s0 + $0xf8] sm:$0xf]
    %v108 = vld [vmem:[%s0 + $0xfc] sm:$0xf]
    %v109 = vld [vmem:[%s0 + $0x100] sm:$0xf]
    %v110 = vld [vmem:[%s0 + $0x104] sm:$0xf]
    %v111 = vld [vmem:[%s0 + $0x108] sm:$0xf]
    %v112 = vld [vmem:[%s0 + $0x10c] sm:$0xf]
    %v113 = vld [vmem:[%s0 + $0x110] sm:$0xf]
    %v114 = vld [vmem:[%s0 + $0x114] sm:$0xf]
    %v115 = vld [vmem:[%s0 + $0x118] sm:$0xf]
    %v116 = vld [vmem:[%s0 + $0x11c] sm:$0xf]
    %v117 = vld [vmem:[%s0 + $0x120] sm:$0xf]
    %v118 = vld [vmem:[%s0 + $0x124] sm:$0xf]
    %v119 = vld [vmem:[%s0 + $0x128] sm:$0xf]
    %v120 = vld [vmem:[%s0 + $0x12c] sm:$0xf]
    %v121 = vld [vmem:[%s0 + $0x130] sm:$0xf]
    %v122 = vld [vmem:[%s0 + $0x134] sm:$0xf]
    %v123 = vld [vmem:[%s0 + $0x138] sm:$0xf]
    %v124 = vld [vmem:[%s0 + $0x13c] sm:$0xf]
    %v125 = vld [vmem:[%s0 + $0x140] sm:$0xf]
    %v126 = vld [vmem:[%s0 + $0x144] sm:$0xf]
    %v127 = vld [vmem:[%s0 + $0x148] sm:$0xf]
    %v128 = vld [vmem:[%s0 + $0x14c] sm:$0xf]
    %v129 = vld [vmem:[%s0 + $0x150] sm:$0xf]
    %v130 = vld [vmem:[%s0 + $0x154] sm:$0xf]
    %v131 = vld [vmem:[%s0 + $0x158] sm:$0xf]
    %v132 = vld [vmem:[%s0 + $0x15c] sm:$0xf]
    %v133 = vld [vmem:[%s0 + $0x160] sm:$0xf]
    %v134 = vld [vmem:[%s0 + $0x164] sm:$0xf]
    %v135 = vld [vmem:[%s0 + $0x168] sm:$0xf]
    %v136 = vld [vmem:[%s0 + $0x16c] sm:$0xf]
    %v137 = vld [vmem:[%s0 + $0x170] sm:$0xf]
    %v138 = vld [vmem:[%s0 + $0x174] sm:$0xf]
    %v139 = vld [vmem:[%s0 + $0x178] sm:$0xf]
    %v140 = vld [vmem:[%s0 + $0x17c] sm:$0xf]
    %v141 = vld [vmem:[%s0 + $0x180] sm:$0xf]
    %v142 = vld [vmem:[%s0 + $0x184] sm:$0xf]
    %v143 = vld [vmem:[%s0 + $0x188] sm:$0xf]
    %v144 = vld [vmem:[%s0 + $0x18c] sm:$0xf]
    %v145 = vld [vmem:[%s0 + $0x190] sm:$0xf]
    %v146 = vld [vmem:[%s0 + $0x194] sm:$0xf]
    %v147 = vld [vmem:[%s0 + $0x198] sm:$0xf]
    %v148 = vld [vmem:[%s0 + $0x19c] sm:$0xf]
    %v149 = vld [vmem:[%s0 + $0x1a0] sm:$0xf]
    %v150 = vld [vmem:[%s0 + $0x1a4] sm:$0xf]
    %v151 = vld [vmem:[%s0 + $0x1a8] sm:$0xf]
    %v152 = vld [vmem:[%s0 + $0x1ac] sm:$0xf]
    %v153 = vld [vmem:[%s0 + $0x1b0] sm:$0xf]
    %v154 = vld [vmem:[%s0 + $0x1b4] sm:$0xf]
    %v155 = vld [vmem:[%s0 + $0x1b8] sm:$0xf]
    %v156 = vld [vmem:[%s0 + $0x1bc] sm:$0xf]
    %v157 = vld [vmem:[%s0 + $0x1c0] sm:$0xf]
    %v158 = vld [vmem:[%s0 + $0x1c4] sm:$0xf]
    %v159 = vld [vmem:[%s0 + $0x1c8] sm:$0xf]
    %v160 = vld [vmem:[%s0 + $0x1cc] sm:$0xf]
    %v161 = vld [vmem:[%s0 + $0x1d0] sm:$0xf]
    %v162 = vld [vmem:[%s0 + $0x1d4] sm:$0xf]
    %v163 = vld [vmem:[%s0 + $0x1d8] sm:$0xf]
    %v164 = vld [vmem:[%s0 + $0x1dc] sm:$0xf]
    %v165 = vld [vmem:[%s0 + $0x1e0] sm:$0xf]
    %v166 = vld [vmem:[%s0 + $0x1e4] sm:$0xf]
    %v167 = vld [vmem:[%s0 + $0x1e8] sm:$0xf]
    %v168 = vld [vmem:[%s0 + $0x1ec] sm:$0xf]
    %v169 = vld [vmem:[%s0 + $0x1f0] sm:$0xf]
    %v170 = vld [vmem:[%s0 + $0x1f4] sm:$0xf]
    %v171 = vld [vmem:[%s0 + $0x1f8] sm:$0xf]
    %v172 = vld [vmem:[%s0 + $0x1fc] sm:$0xf]
    %v173 = vunpack.c.l.bf16 %v45
    %v174 = vunpack.c.l.bf16 %v46
    %v175 = vunpack.c.l.bf16 %v47
    %v176 = vunpack.c.l.bf16 %v48
    %v177 = vunpack.c.l.bf16 %v49
    %v178 = vunpack.c.l.bf16 %v50
    %v179 = vunpack.c.l.bf16 %v51
    %v180 = vunpack.c.l.bf16 %v52
    %v181 = vunpack.c.l.bf16 %v53
    %v182 = vunpack.c.l.bf16 %v54
    %v183 = vunpack.c.l.bf16 %v55
    %v184 = vunpack.c.l.bf16 %v56
    %v185 = vunpack.c.l.bf16 %v57
    %v186 = vunpack.c.l.bf16 %v58
    %v187 = vunpack.c.l.bf16 %v59
    %v188 = vunpack.c.l.bf16 %v60
    %v189 = vunpack.c.l.bf16 %v61
    %v190 = vunpack.c.l.bf16 %v62
    %v191 = vunpack.c.l.bf16 %v63
    %v192 = vunpack.c.l.bf16 %v64
    %v193 = vunpack.c.l.bf16 %v65
    %v194 = vunpack.c.l.bf16 %v66
    %v195 = vunpack.c.l.bf16 %v67
    %v196 = vunpack.c.l.bf16 %v68
    %v197 = vunpack.c.l.bf16 %v69
    %v198 = vunpack.c.l.bf16 %v70
    %v199 = vunpack.c.l.bf16 %v71
    %v200 = vunpack.c.l.bf16 %v72
    %v201 = vunpack.c.l.bf16 %v73
    %v202 = vunpack.c.l.bf16 %v74
    %v203 = vunpack.c.l.bf16 %v75
    %v204 = vunpack.c.l.bf16 %v76
    %v205 = vunpack.c.l.bf16 %v77
    %v206 = vunpack.c.l.bf16 %v78
    %v207 = vunpack.c.l.bf16 %v79
    %v208 = vunpack.c.l.bf16 %v80
    %v209 = vunpack.c.l.bf16 %v81
    %v210 = vunpack.c.l.bf16 %v82
    %v211 = vunpack.c.l.bf16 %v83
    %v212 = vunpack.c.l.bf16 %v84
    %v213 = vunpack.c.l.bf16 %v85
    %v214 = vunpack.c.l.bf16 %v86
    %v215 = vunpack.c.l.bf16 %v87
    %v216 = vunpack.c.l.bf16 %v88
    %v217 = vunpack.c.l.bf16 %v89
    %v218 = vunpack.c.l.bf16 %v90
    %v219 = vunpack.c.l.bf16 %v91
    %v220 = vunpack.c.l.bf16 %v92
    %v221 = vunpack.c.l.bf16 %v93
    %v222 = vunpack.c.l.bf16 %v94
    %v223 = vunpack.c.l.bf16 %v95
    %v224 = vunpack.c.l.bf16 %v96
    %v225 = vunpack.c.l.bf16 %v97
    %v226 = vunpack.c.l.bf16 %v98
    %v227 = vunpack.c.l.bf16 %v99
    %v228 = vunpack.c.l.bf16 %v100
    %v229 = vunpack.c.l.bf16 %v101
    %v230 = vunpack.c.l.bf16 %v102
    %v231 = vunpack.c.l.bf16 %v103
    %v232 = vunpack.c.l.bf16 %v104
    %v233 = vunpack.c.l.bf16 %v105
    %v234 = vunpack.c.l.bf16 %v106
    %v235 = vunpack.c.l.bf16 %v107
    %v236 = vunpack.c.l.bf16 %v108
    %v237 = vunpack.c.l.bf16 %v109
    %v238 = vunpack.c.l.bf16 %v110
    %v239 = vunpack.c.l.bf16 %v111
    %v240 = vunpack.c.l.bf16 %v112
    %v241 = vunpack.c.l.bf16 %v113
    %v242 = vunpack.c.l.bf16 %v114
    %v243 = vunpack.c.l.bf16 %v115
    %v244 = vunpack.c.l.bf16 %v116
    %v245 = vunpack.c.l.bf16 %v117
    %v246 = vunpack.c.l.bf16 %v118
    %v247 = vunpack.c.l.bf16 %v119
    %v248 = vunpack.c.l.bf16 %v120
    %v249 = vunpack.c.l.bf16 %v121
    %v250 = vunpack.c.l.bf16 %v122
    %v251 = vunpack.c.l.bf16 %v123
    %v252 = vunpack.c.l.bf16 %v124
    %v253 = vunpack.c.l.bf16 %v125
    %v254 = vunpack.c.l.bf16 %v126
    %v255 = vunpack.c.l.bf16 %v127
    %v256 = vunpack.c.l.bf16 %v128
    %v257 = vunpack.c.l.bf16 %v129
    %v258 = vunpack.c.l.bf16 %v130
    %v259 = vunpack.c.l.bf16 %v131
    %v260 = vunpack.c.l.bf16 %v132
    %v261 = vunpack.c.l.bf16 %v133
    %v262 = vunpack.c.l.bf16 %v134
    %v263 = vunpack.c.l.bf16 %v135
    %v264 = vunpack.c.l.bf16 %v136
    %v265 = vunpack.c.l.bf16 %v137
    %v266 = vunpack.c.l.bf16 %v138
    %v267 = vunpack.c.l.bf16 %v139
    %v268 = vunpack.c.l.bf16 %v140
    %v269 = vunpack.c.l.bf16 %v141
    %v270 = vunpack.c.l.bf16 %v142
    %v271 = vunpack.c.l.bf16 %v143
    %v272 = vunpack.c.l.bf16 %v144
    %v273 = vunpack.c.l.bf16 %v145
    %v274 = vunpack.c.l.bf16 %v146
    %v275 = vunpack.c.l.bf16 %v147
    %v276 = vunpack.c.l.bf16 %v148
    %v277 = vunpack.c.l.bf16 %v149
    %v278 = vunpack.c.l.bf16 %v150
    %v279 = vunpack.c.l.bf16 %v151
    %v280 = vunpack.c.l.bf16 %v152
    %v281 = vunpack.c.l.bf16 %v153
    %v282 = vunpack.c.l.bf16 %v154
    %v283 = vunpack.c.l.bf16 %v155
    %v284 = vunpack.c.l.bf16 %v156
    %v285 = vunpack.c.l.bf16 %v157
    %v286 = vunpack.c.l.bf16 %v158
    %v287 = vunpack.c.l.bf16 %v159
    %v288 = vunpack.c.l.bf16 %v160
    %v289 = vunpack.c.l.bf16 %v161
    %v290 = vunpack.c.l.bf16 %v162
    %v291 = vunpack.c.l.bf16 %v163
    %v292 = vunpack.c.l.bf16 %v164
    %v293 = vunpack.c.l.bf16 %v165
    %v294 = vunpack.c.l.bf16 %v166
    %v295 = vunpack.c.l.bf16 %v167
    %v296 = vunpack.c.l.bf16 %v168
    %v297 = vunpack.c.l.bf16 %v169
    %v298 = vunpack.c.l.bf16 %v170
    %v299 = vunpack.c.l.bf16 %v171
    %v300 = vunpack.c.l.bf16 %v172
    %vm301 = vcmask 523264
    %v302 = vsel %vm301, %v173, 0.0
    %303 = vadd.xlane.f32.xlu0 %v302
    %v304 = vpop.xlane.xlu0 %303
    %v305 = vsel %vm301, %v174, 0.0
    %306 = vadd.xlane.f32.xlu0 %v305
    %v307 = vpop.xlane.xlu0 %306
    %v308 = vsel %vm301, %v175, 0.0
    %309 = vadd.xlane.f32.xlu0 %v308
    %v310 = vpop.xlane.xlu0 %309
    %v311 = vsel %vm301, %v176, 0.0
    %312 = vadd.xlane.f32.xlu0 %v311
    %v313 = vpop.xlane.xlu0 %312
    %v314 = vsel %vm301, %v177, 0.0
    %315 = vadd.xlane.f32.xlu0 %v314
    %v316 = vpop.xlane.xlu0 %315
    %v317 = vsel %vm301, %v178, 0.0
    %318 = vadd.xlane.f32.xlu0 %v317
    %v319 = vpop.xlane.xlu0 %318
    %v320 = vsel %vm301, %v179, 0.0
    %321 = vadd.xlane.f32.xlu0 %v320
    %v322 = vpop.xlane.xlu0 %321
    %v323 = vsel %vm301, %v180, 0.0
    %324 = vadd.xlane.f32.xlu0 %v323
    %v325 = vpop.xlane.xlu0 %324
    %v326 = vsel %vm301, %v181, 0.0
    %327 = vadd.xlane.f32.xlu0 %v326
    %v328 = vpop.xlane.xlu0 %327
    %v329 = vsel %vm301, %v182, 0.0
    %330 = vadd.xlane.f32.xlu0 %v329
    %v331 = vpop.xlane.xlu0 %330
    %v332 = vsel %vm301, %v183, 0.0
    %333 = vadd.xlane.f32.xlu0 %v332
    %v334 = vpop.xlane.xlu0 %333
    %v335 = vsel %vm301, %v184, 0.0
    %336 = vadd.xlane.f32.xlu0 %v335
    %v337 = vpop.xlane.xlu0 %336
    %v338 = vsel %vm301, %v185, 0.0
    %339 = vadd.xlane.f32.xlu0 %v338
    %v340 = vpop.xlane.xlu0 %339
    %v341 = vsel %vm301, %v186, 0.0
    %342 = vadd.xlane.f32.xlu0 %v341
    %v343 = vpop.xlane.xlu0 %342
    %v344 = vsel %vm301, %v187, 0.0
    %345 = vadd.xlane.f32.xlu0 %v344
    %v346 = vpop.xlane.xlu0 %345
    %v347 = vsel %vm301, %v188, 0.0
    %348 = vadd.xlane.f32.xlu0 %v347
    %v349 = vpop.xlane.xlu0 %348
    %v350 = vsel %vm301, %v189, 0.0
    %351 = vadd.xlane.f32.xlu0 %v350
    %v352 = vpop.xlane.xlu0 %351
    %v353 = vsel %vm301, %v190, 0.0
    %354 = vadd.xlane.f32.xlu0 %v353
    %v355 = vpop.xlane.xlu0 %354
    %v356 = vsel %vm301, %v191, 0.0
    %357 = vadd.xlane.f32.xlu0 %v356
    %v358 = vpop.xlane.xlu0 %357
    %v359 = vsel %vm301, %v192, 0.0
    %360 = vadd.xlane.f32.xlu0 %v359
    %v361 = vpop.xlane.xlu0 %360
    %v362 = vsel %vm301, %v193, 0.0
    %363 = vadd.xlane.f32.xlu0 %v362
    %v364 = vpop.xlane.xlu0 %363
    %v365 = vsel %vm301, %v194, 0.0
    %366 = vadd.xlane.f32.xlu0 %v365
    %v367 = vpop.xlane.xlu0 %366
    %v368 = vsel %vm301, %v195, 0.0
    %369 = vadd.xlane.f32.xlu0 %v368
    %v370 = vpop.xlane.xlu0 %369
    %v371 = vsel %vm301, %v196, 0.0
    %372 = vadd.xlane.f32.xlu0 %v371
    %v373 = vpop.xlane.xlu0 %372
    %v374 = vsel %vm301, %v197, 0.0
    %375 = vadd.xlane.f32.xlu0 %v374
    %v376 = vpop.xlane.xlu0 %375
    %v377 = vsel %vm301, %v198, 0.0
    %378 = vadd.xlane.f32.xlu0 %v377
    %v379 = vpop.xlane.xlu0 %378
    %v380 = vsel %vm301, %v199, 0.0
    %381 = vadd.xlane.f32.xlu0 %v380
    %v382 = vpop.xlane.xlu0 %381
    %v383 = vsel %vm301, %v200, 0.0
    %384 = vadd.xlane.f32.xlu0 %v383
    %v385 = vpop.xlane.xlu0 %384
    %v386 = vsel %vm301, %v201, 0.0
    %387 = vadd.xlane.f32.xlu0 %v386
    %v388 = vpop.xlane.xlu0 %387
    %v389 = vsel %vm301, %v202, 0.0
    %390 = vadd.xlane.f32.xlu0 %v389
    %v391 = vpop.xlane.xlu0 %390
    %v392 = vsel %vm301, %v203, 0.0
    %393 = vadd.xlane.f32.xlu0 %v392
    %v394 = vpop.xlane.xlu0 %393
    %v395 = vsel %vm301, %v204, 0.0
    %396 = vadd.xlane.f32.xlu0 %v395
    %v397 = vpop.xlane.xlu0 %396
    %v398 = vsel %vm301, %v205, 0.0
    %399 = vadd.xlane.f32.xlu0 %v398
    %v400 = vpop.xlane.xlu0 %399
    %v401 = vsel %vm301, %v206, 0.0
    %402 = vadd.xlane.f32.xlu0 %v401
    %v403 = vpop.xlane.xlu0 %402
    %v404 = vsel %vm301, %v207, 0.0
    %405 = vadd.xlane.f32.xlu0 %v404
    %v406 = vpop.xlane.xlu0 %405
    %v407 = vsel %vm301, %v208, 0.0
    %408 = vadd.xlane.f32.xlu0 %v407
    %v409 = vpop.xlane.xlu0 %408
    %v410 = vsel %vm301, %v209, 0.0
    %411 = vadd.xlane.f32.xlu0 %v410
    %v412 = vpop.xlane.xlu0 %411
    %v413 = vsel %vm301, %v210, 0.0
    %414 = vadd.xlane.f32.xlu0 %v413
    %v415 = vpop.xlane.xlu0 %414
    %v416 = vsel %vm301, %v211, 0.0
    %417 = vadd.xlane.f32.xlu0 %v416
    %v418 = vpop.xlane.xlu0 %417
    %v419 = vsel %vm301, %v212, 0.0
    %420 = vadd.xlane.f32.xlu0 %v419
    %v421 = vpop.xlane.xlu0 %420
    %v422 = vsel %vm301, %v213, 0.0
    %423 = vadd.xlane.f32.xlu0 %v422
    %v424 = vpop.xlane.xlu0 %423
    %v425 = vsel %vm301, %v214, 0.0
    %426 = vadd.xlane.f32.xlu0 %v425
    %v427 = vpop.xlane.xlu0 %426
    %v428 = vsel %vm301, %v215, 0.0
    %429 = vadd.xlane.f32.xlu0 %v428
    %v430 = vpop.xlane.xlu0 %429
    %v431 = vsel %vm301, %v216, 0.0
    %432 = vadd.xlane.f32.xlu0 %v431
    %v433 = vpop.xlane.xlu0 %432
    %v434 = vsel %vm301, %v217, 0.0
    %435 = vadd.xlane.f32.xlu0 %v434
    %v436 = vpop.xlane.xlu0 %435
    %v437 = vsel %vm301, %v218, 0.0
    %438 = vadd.xlane.f32.xlu0 %v437
    %v439 = vpop.xlane.xlu0 %438
    %v440 = vsel %vm301, %v219, 0.0
    %441 = vadd.xlane.f32.xlu0 %v440
    %v442 = vpop.xlane.xlu0 %441
    %v443 = vsel %vm301, %v220, 0.0
    %444 = vadd.xlane.f32.xlu0 %v443
    %v445 = vpop.xlane.xlu0 %444
    %v446 = vsel %vm301, %v221, 0.0
    %447 = vadd.xlane.f32.xlu0 %v446
    %v448 = vpop.xlane.xlu0 %447
    %v449 = vsel %vm301, %v222, 0.0
    %450 = vadd.xlane.f32.xlu0 %v449
    %v451 = vpop.xlane.xlu0 %450
    %v452 = vsel %vm301, %v223, 0.0
    %453 = vadd.xlane.f32.xlu0 %v452
    %v454 = vpop.xlane.xlu0 %453
    %v455 = vsel %vm301, %v224, 0.0
    %456 = vadd.xlane.f32.xlu0 %v455
    %v457 = vpop.xlane.xlu0 %456
    %v458 = vsel %vm301, %v225, 0.0
    %459 = vadd.xlane.f32.xlu0 %v458
    %v460 = vpop.xlane.xlu0 %459
    %v461 = vsel %vm301, %v226, 0.0
    %462 = vadd.xlane.f32.xlu0 %v461
    %v463 = vpop.xlane.xlu0 %462
    %v464 = vsel %vm301, %v227, 0.0
    %465 = vadd.xlane.f32.xlu0 %v464
    %v466 = vpop.xlane.xlu0 %465
    %v467 = vsel %vm301, %v228, 0.0
    %468 = vadd.xlane.f32.xlu0 %v467
    %v469 = vpop.xlane.xlu0 %468
    %v470 = vsel %vm301, %v229, 0.0
    %471 = vadd.xlane.f32.xlu0 %v470
    %v472 = vpop.xlane.xlu0 %471
    %v473 = vsel %vm301, %v230, 0.0
    %474 = vadd.xlane.f32.xlu0 %v473
    %v475 = vpop.xlane.xlu0 %474
    %v476 = vsel %vm301, %v231, 0.0
    %477 = vadd.xlane.f32.xlu0 %v476
    %v478 = vpop.xlane.xlu0 %477
    %v479 = vsel %vm301, %v232, 0.0
    %480 = vadd.xlane.f32.xlu0 %v479
    %v481 = vpop.xlane.xlu0 %480
    %v482 = vsel %vm301, %v233, 0.0
    %483 = vadd.xlane.f32.xlu0 %v482
    %v484 = vpop.xlane.xlu0 %483
    %v485 = vsel %vm301, %v234, 0.0
    %486 = vadd.xlane.f32.xlu0 %v485
    %v487 = vpop.xlane.xlu0 %486
    %v488 = vsel %vm301, %v235, 0.0
    %489 = vadd.xlane.f32.xlu0 %v488
    %v490 = vpop.xlane.xlu0 %489
    %v491 = vsel %vm301, %v236, 0.0
    %492 = vadd.xlane.f32.xlu0 %v491
    %v493 = vpop.xlane.xlu0 %492
    %v494 = vsel %vm301, %v237, 0.0
    %495 = vadd.xlane.f32.xlu0 %v494
    %v496 = vpop.xlane.xlu0 %495
    %v497 = vsel %vm301, %v238, 0.0
    %498 = vadd.xlane.f32.xlu0 %v497
    %v499 = vpop.xlane.xlu0 %498
    %v500 = vsel %vm301, %v239, 0.0
    %501 = vadd.xlane.f32.xlu0 %v500
    %v502 = vpop.xlane.xlu0 %501
    %v503 = vsel %vm301, %v240, 0.0
    %504 = vadd.xlane.f32.xlu0 %v503
    %v505 = vpop.xlane.xlu0 %504
    %v506 = vsel %vm301, %v241, 0.0
    %507 = vadd.xlane.f32.xlu0 %v506
    %v508 = vpop.xlane.xlu0 %507
    %v509 = vsel %vm301, %v242, 0.0
    %510 = vadd.xlane.f32.xlu0 %v509
    %v511 = vpop.xlane.xlu0 %510
    %v512 = vsel %vm301, %v243, 0.0
    %513 = vadd.xlane.f32.xlu0 %v512
    %v514 = vpop.xlane.xlu0 %513
    %v515 = vsel %vm301, %v244, 0.0
    %516 = vadd.xlane.f32.xlu0 %v515
    %v517 = vpop.xlane.xlu0 %516
    %v518 = vsel %vm301, %v245, 0.0
    %519 = vadd.xlane.f32.xlu0 %v518
    %v520 = vpop.xlane.xlu0 %519
    %v521 = vsel %vm301, %v246, 0.0
    %522 = vadd.xlane.f32.xlu0 %v521
    %v523 = vpop.xlane.xlu0 %522
    %v524 = vsel %vm301, %v247, 0.0
    %525 = vadd.xlane.f32.xlu0 %v524
    %v526 = vpop.xlane.xlu0 %525
    %v527 = vsel %vm301, %v248, 0.0
    %528 = vadd.xlane.f32.xlu0 %v527
    %v529 = vpop.xlane.xlu0 %528
    %v530 = vsel %vm301, %v249, 0.0
    %531 = vadd.xlane.f32.xlu0 %v530
    %v532 = vpop.xlane.xlu0 %531
    %v533 = vsel %vm301, %v250, 0.0
    %534 = vadd.xlane.f32.xlu0 %v533
    %v535 = vpop.xlane.xlu0 %534
    %v536 = vsel %vm301, %v251, 0.0
    %537 = vadd.xlane.f32.xlu0 %v536
    %v538 = vpop.xlane.xlu0 %537
    %v539 = vsel %vm301, %v252, 0.0
    %540 = vadd.xlane.f32.xlu0 %v539
    %v541 = vpop.xlane.xlu0 %540
    %v542 = vsel %vm301, %v253, 0.0
    %543 = vadd.xlane.f32.xlu0 %v542
    %v544 = vpop.xlane.xlu0 %543
    %v545 = vsel %vm301, %v254, 0.0
    %546 = vadd.xlane.f32.xlu0 %v545
    %v547 = vpop.xlane.xlu0 %546
    %v548 = vsel %vm301, %v255, 0.0
    %549 = vadd.xlane.f32.xlu0 %v548
    %v550 = vpop.xlane.xlu0 %549
    %v551 = vsel %vm301, %v256, 0.0
    %552 = vadd.xlane.f32.xlu0 %v551
    %v553 = vpop.xlane.xlu0 %552
    %v554 = vsel %vm301, %v257, 0.0
    %555 = vadd.xlane.f32.xlu0 %v554
    %v556 = vpop.xlane.xlu0 %555
    %v557 = vsel %vm301, %v258, 0.0
    %558 = vadd.xlane.f32.xlu0 %v557
    %v559 = vpop.xlane.xlu0 %558
    %v560 = vsel %vm301, %v259, 0.0
    %561 = vadd.xlane.f32.xlu0 %v560
    %v562 = vpop.xlane.xlu0 %561
    %v563 = vsel %vm301, %v260, 0.0
    %564 = vadd.xlane.f32.xlu0 %v563
    %v565 = vpop.xlane.xlu0 %564
    %v566 = vsel %vm301, %v261, 0.0
    %567 = vadd.xlane.f32.xlu0 %v566
    %v568 = vpop.xlane.xlu0 %567
    %v569 = vsel %vm301, %v262, 0.0
    %570 = vadd.xlane.f32.xlu0 %v569
    %v571 = vpop.xlane.xlu0 %570
    %v572 = vsel %vm301, %v263, 0.0
    %573 = vadd.xlane.f32.xlu0 %v572
    %v574 = vpop.xlane.xlu0 %573
    %v575 = vsel %vm301, %v264, 0.0
    %576 = vadd.xlane.f32.xlu0 %v575
    %v577 = vpop.xlane.xlu0 %576
    %v578 = vsel %vm301, %v265, 0.0
    %579 = vadd.xlane.f32.xlu0 %v578
    %v580 = vpop.xlane.xlu0 %579
    %v581 = vsel %vm301, %v266, 0.0
    %582 = vadd.xlane.f32.xlu0 %v581
    %v583 = vpop.xlane.xlu0 %582
    %v584 = vsel %vm301, %v267, 0.0
    %585 = vadd.xlane.f32.xlu0 %v584
    %v586 = vpop.xlane.xlu0 %585
    %v587 = vsel %vm301, %v268, 0.0
    %588 = vadd.xlane.f32.xlu0 %v587
    %v589 = vpop.xlane.xlu0 %588
    %v590 = vsel %vm301, %v269, 0.0
    %591 = vadd.xlane.f32.xlu0 %v590
    %v592 = vpop.xlane.xlu0 %591
    %v593 = vsel %vm301, %v270, 0.0
    %594 = vadd.xlane.f32.xlu0 %v593
    %v595 = vpop.xlane.xlu0 %594
    %v596 = vsel %vm301, %v271, 0.0
    %597 = vadd.xlane.f32.xlu0 %v596
    %v598 = vpop.xlane.xlu0 %597
    %v599 = vsel %vm301, %v272, 0.0
    %600 = vadd.xlane.f32.xlu0 %v599
    %v601 = vpop.xlane.xlu0 %600
    %v602 = vsel %vm301, %v273, 0.0
    %603 = vadd.xlane.f32.xlu0 %v602
    %v604 = vpop.xlane.xlu0 %603
    %v605 = vsel %vm301, %v274, 0.0
    %606 = vadd.xlane.f32.xlu0 %v605
    %v607 = vpop.xlane.xlu0 %606
    %v608 = vsel %vm301, %v275, 0.0
    %609 = vadd.xlane.f32.xlu0 %v608
    %v610 = vpop.xlane.xlu0 %609
    %v611 = vsel %vm301, %v276, 0.0
    %612 = vadd.xlane.f32.xlu0 %v611
    %v613 = vpop.xlane.xlu0 %612
    %v614 = vsel %vm301, %v277, 0.0
    %615 = vadd.xlane.f32.xlu0 %v614
    %v616 = vpop.xlane.xlu0 %615
    %v617 = vsel %vm301, %v278, 0.0
    %618 = vadd.xlane.f32.xlu0 %v617
    %v619 = vpop.xlane.xlu0 %618
    %v620 = vsel %vm301, %v279, 0.0
    %621 = vadd.xlane.f32.xlu0 %v620
    %v622 = vpop.xlane.xlu0 %621
    %v623 = vsel %vm301, %v280, 0.0
    %624 = vadd.xlane.f32.xlu0 %v623
    %v625 = vpop.xlane.xlu0 %624
    %v626 = vsel %vm301, %v281, 0.0
    %627 = vadd.xlane.f32.xlu0 %v626
    %v628 = vpop.xlane.xlu0 %627
    %v629 = vsel %vm301, %v282, 0.0
    %630 = vadd.xlane.f32.xlu0 %v629
    %v631 = vpop.xlane.xlu0 %630
    %v632 = vsel %vm301, %v283, 0.0
    %633 = vadd.xlane.f32.xlu0 %v632
    %v634 = vpop.xlane.xlu0 %633
    %v635 = vsel %vm301, %v284, 0.0
    %636 = vadd.xlane.f32.xlu0 %v635
    %v637 = vpop.xlane.xlu0 %636
    %v638 = vsel %vm301, %v285, 0.0
    %639 = vadd.xlane.f32.xlu0 %v638
    %v640 = vpop.xlane.xlu0 %639
    %v641 = vsel %vm301, %v286, 0.0
    %642 = vadd.xlane.f32.xlu0 %v641
    %v643 = vpop.xlane.xlu0 %642
    %v644 = vsel %vm301, %v287, 0.0
    %645 = vadd.xlane.f32.xlu0 %v644
    %v646 = vpop.xlane.xlu0 %645
    %v647 = vsel %vm301, %v288, 0.0
    %648 = vadd.xlane.f32.xlu0 %v647
    %v649 = vpop.xlane.xlu0 %648
    %v650 = vsel %vm301, %v289, 0.0
    %651 = vadd.xlane.f32.xlu0 %v650
    %v652 = vpop.xlane.xlu0 %651
    %v653 = vsel %vm301, %v290, 0.0
    %654 = vadd.xlane.f32.xlu0 %v653
    %v655 = vpop.xlane.xlu0 %654
    %v656 = vsel %vm301, %v291, 0.0
    %657 = vadd.xlane.f32.xlu0 %v656
    %v658 = vpop.xlane.xlu0 %657
    %v659 = vsel %vm301, %v292, 0.0
    %660 = vadd.xlane.f32.xlu0 %v659
    %v661 = vpop.xlane.xlu0 %660
    %v662 = vsel %vm301, %v293, 0.0
    %663 = vadd.xlane.f32.xlu0 %v662
    %v664 = vpop.xlane.xlu0 %663
    %v665 = vsel %vm301, %v294, 0.0
    %666 = vadd.xlane.f32.xlu0 %v665
    %v667 = vpop.xlane.xlu0 %666
    %v668 = vsel %vm301, %v295, 0.0
    %669 = vadd.xlane.f32.xlu0 %v668
    %v670 = vpop.xlane.xlu0 %669
    %v671 = vsel %vm301, %v296, 0.0
    %672 = vadd.xlane.f32.xlu0 %v671
    %v673 = vpop.xlane.xlu0 %672
    %v674 = vsel %vm301, %v297, 0.0
    %675 = vadd.xlane.f32.xlu0 %v674
    %v676 = vpop.xlane.xlu0 %675
    %v677 = vsel %vm301, %v298, 0.0
    %678 = vadd.xlane.f32.xlu0 %v677
    %v679 = vpop.xlane.xlu0 %678
    %v680 = vsel %vm301, %v299, 0.0
    %681 = vadd.xlane.f32.xlu0 %v680
    %v682 = vpop.xlane.xlu0 %681
    %v683 = vsel %vm301, %v300, 0.0
    %684 = vadd.xlane.f32.xlu0 %v683
    %v685 = vpop.xlane.xlu0 %684
    %v686 = vld [vmem:[#allocation2] sm:$0xf]
    %v687 = vld [vmem:[%s6] sm:$0xf]
    %v688 = vld [vmem:[%s6 + $0x4] sm:$0xf]
    %v689 = vld [vmem:[%s6 + $0x8] sm:$0xf]
    %v690 = vld [vmem:[%s6 + $0xc] sm:$0xf]
    %v691 = vld [vmem:[%s6 + $0x10] sm:$0xf]
    %v692 = vld [vmem:[%s6 + $0x14] sm:$0xf]
    %v693 = vld [vmem:[%s6 + $0x18] sm:$0xf]
    %v694 = vld [vmem:[%s6 + $0x1c] sm:$0xf]
    %v695 = vld [vmem:[%s6 + $0x20] sm:$0xf]
    %v696 = vld [vmem:[%s6 + $0x24] sm:$0xf]
    %v697 = vld [vmem:[%s6 + $0x28] sm:$0xf]
    %v698 = vld [vmem:[%s6 + $0x2c] sm:$0xf]
    %v699 = vld [vmem:[%s6 + $0x30] sm:$0xf]
    %v700 = vld [vmem:[%s6 + $0x34] sm:$0xf]
    %v701 = vld [vmem:[%s6 + $0x38] sm:$0xf]
    %v702 = vld [vmem:[%s6 + $0x3c] sm:$0xf]
    %v703 = vld [vmem:[%s6 + $0x40] sm:$0xf]
    %v704 = vld [vmem:[%s6 + $0x44] sm:$0xf]
    %v705 = vld [vmem:[%s6 + $0x48] sm:$0xf]
    %v706 = vld [vmem:[%s6 + $0x4c] sm:$0xf]
    %v707 = vld [vmem:[%s6 + $0x50] sm:$0xf]
    %v708 = vld [vmem:[%s6 + $0x54] sm:$0xf]
    %v709 = vld [vmem:[%s6 + $0x58] sm:$0xf]
    %v710 = vld [vmem:[%s6 + $0x5c] sm:$0xf]
    %v711 = vld [vmem:[%s6 + $0x60] sm:$0xf]
    %v712 = vld [vmem:[%s6 + $0x64] sm:$0xf]
    %v713 = vld [vmem:[%s6 + $0x68] sm:$0xf]
    %v714 = vld [vmem:[%s6 + $0x6c] sm:$0xf]
    %v715 = vld [vmem:[%s6 + $0x70] sm:$0xf]
    %v716 = vld [vmem:[%s6 + $0x74] sm:$0xf]
    %v717 = vld [vmem:[%s6 + $0x78] sm:$0xf]
    %v718 = vld [vmem:[%s6 + $0x7c] sm:$0xf]
    %v719 = vunpack.c.l.bf16 %v687
    %v720 = vunpack.c.l.bf16 %v688
    %v721 = vunpack.c.l.bf16 %v689
    %v722 = vunpack.c.l.bf16 %v690
    %v723 = vunpack.c.l.bf16 %v691
    %v724 = vunpack.c.l.bf16 %v692
    %v725 = vunpack.c.l.bf16 %v693
    %v726 = vunpack.c.l.bf16 %v694
    %v727 = vunpack.c.l.bf16 %v695
    %v728 = vunpack.c.l.bf16 %v696
    %v729 = vunpack.c.l.bf16 %v697
    %v730 = vunpack.c.l.bf16 %v698
    %v731 = vunpack.c.l.bf16 %v699
    %v732 = vunpack.c.l.bf16 %v700
    %v733 = vunpack.c.l.bf16 %v701
    %v734 = vunpack.c.l.bf16 %v702
    %v735 = vunpack.c.l.bf16 %v703
    %v736 = vunpack.c.l.bf16 %v704
    %v737 = vunpack.c.l.bf16 %v705
    %v738 = vunpack.c.l.bf16 %v706
    %v739 = vunpack.c.l.bf16 %v707
    %v740 = vunpack.c.l.bf16 %v708
    %v741 = vunpack.c.l.bf16 %v709
    %v742 = vunpack.c.l.bf16 %v710
    %v743 = vunpack.c.l.bf16 %v711
    %v744 = vunpack.c.l.bf16 %v712
    %v745 = vunpack.c.l.bf16 %v713
    %v746 = vunpack.c.l.bf16 %v714
    %v747 = vunpack.c.l.bf16 %v715
    %v748 = vunpack.c.l.bf16 %v716
    %v749 = vunpack.c.l.bf16 %v717
    %v750 = vunpack.c.l.bf16 %v718
    %v879 = vlaneseq
    %v880 = vand.u32 %v879, 127
    %v881 = vperm.slane %v304, %v880
    %v882 = vadd.s32 %v880, 4294967288
    %v883 = vperm.slane %v307, %v882
    %vm884 = vcmask 130112
    %v885 = vsel %vm884, %v883, %v881
    %v886 = vadd.s32 %v880, 4294967280
    %v887 = vperm.slane %v310, %v886
    %vm888 = vcmask 195712
    %v889 = vsel %vm888, %v887, %v885
    %v890 = vadd.s32 %v880, 4294967272
    %v891 = vperm.slane %v313, %v890
    %vm892 = vcmask 261312
    %v893 = vsel %vm892, %v891, %v889
    %v894 = vadd.s32 %v880, 4294967264
    %v895 = vperm.slane %v316, %v894
    %vm896 = vcmask 326912
    %v897 = vsel %vm896, %v895, %v893
    %v898 = vadd.s32 %v880, 4294967256
    %v899 = vperm.slane %v319, %v898
    %vm900 = vcmask 392512
    %v901 = vsel %vm900, %v899, %v897
    %v902 = vadd.s32 %v880, 4294967248
    %v903 = vperm.slane %v322, %v902
    %vm904 = vcmask 458112
    %v905 = vsel %vm904, %v903, %v901
    %v906 = vadd.s32 %v880, 4294967240
    %v907 = vperm.slane %v325, %v906
    %vm908 = vcmask 523712
    %v909 = vsel %vm908, %v907, %v905
    %v910 = vadd.s32 %v880, 4294967232
    %v911 = vperm.slane %v328, %v910
    %vm912 = vcmask 589312
    %v913 = vsel %vm912, %v911, %v909
    %v914 = vadd.s32 %v880, 4294967224
    %v915 = vperm.slane %v331, %v914
    %vm916 = vcmask 654912
    %v917 = vsel %vm916, %v915, %v913
    %v918 = vadd.s32 %v880, 4294967216
    %v919 = vperm.slane %v334, %v918
    %vm920 = vcmask 720512
    %v921 = vsel %vm920, %v919, %v917
    %v922 = vadd.s32 %v880, 4294967208
    %v923 = vperm.slane %v337, %v922
    %vm924 = vcmask 786112
    %v925 = vsel %vm924, %v923, %v921
    %v926 = vadd.s32 %v880, 4294967200
    %v927 = vperm.slane %v340, %v926
    %vm928 = vcmask 851712
    %v929 = vsel %vm928, %v927, %v925
    %v930 = vadd.s32 %v880, 4294967192
    %v931 = vperm.slane %v343, %v930
    %vm932 = vcmask 917312
    %v933 = vsel %vm932, %v931, %v929
    %v934 = vadd.s32 %v880, 4294967184
    %v935 = vperm.slane %v346, %v934
    %vm936 = vcmask 982912
    %v937 = vsel %vm936, %v935, %v933
    %v938 = vadd.s32 %v880, 4294967176
    %v939 = vperm.slane %v349, %v938
    %vm940 = vcmask 1048512
    %v941 = vsel %vm940, %v939, %v937
    %v942 = vperm.slane %v352, %v880
    %v943 = vperm.slane %v355, %v882
    %v944 = vsel %vm884, %v943, %v942
    %v945 = vperm.slane %v358, %v886
    %v946 = vsel %vm888, %v945, %v944
    %v947 = vperm.slane %v361, %v890
    %v948 = vsel %vm892, %v947, %v946
    %v949 = vperm.slane %v364, %v894
    %v950 = vsel %vm896, %v949, %v948
    %v951 = vperm.slane %v367, %v898
    %v952 = vsel %vm900, %v951, %v950
    %v953 = vperm.slane %v370, %v902
    %v954 = vsel %vm904, %v953, %v952
    %v955 = vperm.slane %v373, %v906
    %v956 = vsel %vm908, %v955, %v954
    %v957 = vperm.slane %v376, %v910
    %v958 = vsel %vm912, %v957, %v956
    %v959 = vperm.slane %v379, %v914
    %v960 = vsel %vm916, %v959, %v958
    %v961 = vperm.slane %v382, %v918
    %v962 = vsel %vm920, %v961, %v960
    %v963 = vperm.slane %v385, %v922
    %v964 = vsel %vm924, %v963, %v962
    %v965 = vperm.slane %v388, %v926
    %v966 = vsel %vm928, %v965, %v964
    %v967 = vperm.slane %v391, %v930
    %v968 = vsel %vm932, %v967, %v966
    %v969 = vperm.slane %v394, %v934
    %v970 = vsel %vm936, %v969, %v968
    %v971 = vperm.slane %v397, %v938
    %v972 = vsel %vm940, %v971, %v970
    %v973 = vperm.slane %v400, %v880
    %v974 = vperm.slane %v403, %v882
    %v975 = vsel %vm884, %v974, %v973
    %v976 = vperm.slane %v406, %v886
    %v977 = vsel %vm888, %v976, %v975
    %v978 = vperm.slane %v409, %v890
    %v979 = vsel %vm892, %v978, %v977
    %v980 = vperm.slane %v412, %v894
    %v981 = vsel %vm896, %v980, %v979
    %v982 = vperm.slane %v415, %v898
    %v983 = vsel %vm900, %v982, %v981
    %v984 = vperm.slane %v418, %v902
    %v985 = vsel %vm904, %v984, %v983
    %v986 = vperm.slane %v421, %v906
    %v987 = vsel %vm908, %v986, %v985
    %v988 = vperm.slane %v424, %v910
    %v989 = vsel %vm912, %v988, %v987
    %v990 = vperm.slane %v427, %v914
    %v991 = vsel %vm916, %v990, %v989
    %v992 = vperm.slane %v430, %v918
    %v993 = vsel %vm920, %v992, %v991
    %v994 = vperm.slane %v433, %v922
    %v995 = vsel %vm924, %v994, %v993
    %v996 = vperm.slane %v436, %v926
    %v997 = vsel %vm928, %v996, %v995
    %v998 = vperm.slane %v439, %v930
    %v999 = vsel %vm932, %v998, %v997
    %v1000 = vperm.slane %v442, %v934
    %v1001 = vsel %vm936, %v1000, %v999
    %v1002 = vperm.slane %v445, %v938
    %v1003 = vsel %vm940, %v1002, %v1001
    %v1004 = vperm.slane %v448, %v880
    %v1005 = vperm.slane %v451, %v882
    %v1006 = vsel %vm884, %v1005, %v1004
    %v1007 = vperm.slane %v454, %v886
    %v1008 = vsel %vm888, %v1007, %v1006
    %v1009 = vperm.slane %v457, %v890
    %v1010 = vsel %vm892, %v1009, %v1008
    %v1011 = vperm.slane %v460, %v894
    %v1012 = vsel %vm896, %v1011, %v1010
    %v1013 = vperm.slane %v463, %v898
    %v1014 = vsel %vm900, %v1013, %v1012
    %v1015 = vperm.slane %v466, %v902
    %v1016 = vsel %vm904, %v1015, %v1014
    %v1017 = vperm.slane %v469, %v906
    %v1018 = vsel %vm908, %v1017, %v1016
    %v1019 = vperm.slane %v472, %v910
    %v1020 = vsel %vm912, %v1019, %v1018
    %v1021 = vperm.slane %v475, %v914
    %v1022 = vsel %vm916, %v1021, %v1020
    %v1023 = vperm.slane %v478, %v918
    %v1024 = vsel %vm920, %v1023, %v1022
    %v1025 = vperm.slane %v481, %v922
    %v1026 = vsel %vm924, %v1025, %v1024
    %v1027 = vperm.slane %v484, %v926
    %v1028 = vsel %vm928, %v1027, %v1026
    %v1029 = vperm.slane %v487, %v930
    %v1030 = vsel %vm932, %v1029, %v1028
    %v1031 = vperm.slane %v490, %v934
    %v1032 = vsel %vm936, %v1031, %v1030
    %v1033 = vperm.slane %v493, %v938
    %v1034 = vsel %vm940, %v1033, %v1032
    %v1035 = vperm.slane %v496, %v880
    %v1036 = vperm.slane %v499, %v882
    %v1037 = vsel %vm884, %v1036, %v1035
    %v1038 = vperm.slane %v502, %v886
    %v1039 = vsel %vm888, %v1038, %v1037
    %v1040 = vperm.slane %v505, %v890
    %v1041 = vsel %vm892, %v1040, %v1039
    %v1042 = vperm.slane %v508, %v894
    %v1043 = vsel %vm896, %v1042, %v1041
    %v1044 = vperm.slane %v511, %v898
    %v1045 = vsel %vm900, %v1044, %v1043
    %v1046 = vperm.slane %v514, %v902
    %v1047 = vsel %vm904, %v1046, %v1045
    %v1048 = vperm.slane %v517, %v906
    %v1049 = vsel %vm908, %v1048, %v1047
    %v1050 = vperm.slane %v520, %v910
    %v1051 = vsel %vm912, %v1050, %v1049
    %v1052 = vperm.slane %v523, %v914
    %v1053 = vsel %vm916, %v1052, %v1051
    %v1054 = vperm.slane %v526, %v918
    %v1055 = vsel %vm920, %v1054, %v1053
    %v1056 = vperm.slane %v529, %v922
    %v1057 = vsel %vm924, %v1056, %v1055
    %v1058 = vperm.slane %v532, %v926
    %v1059 = vsel %vm928, %v1058, %v1057
    %v1060 = vperm.slane %v535, %v930
    %v1061 = vsel %vm932, %v1060, %v1059
    %v1062 = vperm.slane %v538, %v934
    %v1063 = vsel %vm936, %v1062, %v1061
    %v1064 = vperm.slane %v541, %v938
    %v1065 = vsel %vm940, %v1064, %v1063
    %v1066 = vperm.slane %v544, %v880
    %v1067 = vperm.slane %v547, %v882
    %v1068 = vsel %vm884, %v1067, %v1066
    %v1069 = vperm.slane %v550, %v886
    %v1070 = vsel %vm888, %v1069, %v1068
    %v1071 = vperm.slane %v553, %v890
    %v1072 = vsel %vm892, %v1071, %v1070
    %v1073 = vperm.slane %v556, %v894
    %v1074 = vsel %vm896, %v1073, %v1072
    %v1075 = vperm.slane %v559, %v898
    %v1076 = vsel %vm900, %v1075, %v1074
    %v1077 = vperm.slane %v562, %v902
    %v1078 = vsel %vm904, %v1077, %v1076
    %v1079 = vperm.slane %v565, %v906
    %v1080 = vsel %vm908, %v1079, %v1078
    %v1081 = vperm.slane %v568, %v910
    %v1082 = vsel %vm912, %v1081, %v1080
    %v1083 = vperm.slane %v571, %v914
    %v1084 = vsel %vm916, %v1083, %v1082
    %v1085 = vperm.slane %v574, %v918
    %v1086 = vsel %vm920, %v1085, %v1084
    %v1087 = vperm.slane %v577, %v922
    %v1088 = vsel %vm924, %v1087, %v1086
    %v1089 = vperm.slane %v580, %v926
    %v1090 = vsel %vm928, %v1089, %v1088
    %v1091 = vperm.slane %v583, %v930
    %v1092 = vsel %vm932, %v1091, %v1090
    %v1093 = vperm.slane %v586, %v934
    %v1094 = vsel %vm936, %v1093, %v1092
    %v1095 = vperm.slane %v589, %v938
    %v1096 = vsel %vm940, %v1095, %v1094
    %v1097 = vperm.slane %v592, %v880
    %v1098 = vperm.slane %v595, %v882
    %v1099 = vsel %vm884, %v1098, %v1097
    %v1100 = vperm.slane %v598, %v886
    %v1101 = vsel %vm888, %v1100, %v1099
    %v1102 = vperm.slane %v601, %v890
    %v1103 = vsel %vm892, %v1102, %v1101
    %v1104 = vperm.slane %v604, %v894
    %v1105 = vsel %vm896, %v1104, %v1103
    %v1106 = vperm.slane %v607, %v898
    %v1107 = vsel %vm900, %v1106, %v1105
    %v1108 = vperm.slane %v610, %v902
    %v1109 = vsel %vm904, %v1108, %v1107
    %v1110 = vperm.slane %v613, %v906
    %v1111 = vsel %vm908, %v1110, %v1109
    %v1112 = vperm.slane %v616, %v910
    %v1113 = vsel %vm912, %v1112, %v1111
    %v1114 = vperm.slane %v619, %v914
    %v1115 = vsel %vm916, %v1114, %v1113
    %v1116 = vperm.slane %v622, %v918
    %v1117 = vsel %vm920, %v1116, %v1115
    %v1118 = vperm.slane %v625, %v922
    %v1119 = vsel %vm924, %v1118, %v1117
    %v1120 = vperm.slane %v628, %v926
    %v1121 = vsel %vm928, %v1120, %v1119
    %v1122 = vperm.slane %v631, %v930
    %v1123 = vsel %vm932, %v1122, %v1121
    %v1124 = vperm.slane %v634, %v934
    %v1125 = vsel %vm936, %v1124, %v1123
    %v1126 = vperm.slane %v637, %v938
    %v1127 = vsel %vm940, %v1126, %v1125
    %v1128 = vperm.slane %v640, %v880
    %v1129 = vperm.slane %v643, %v882
    %v1130 = vsel %vm884, %v1129, %v1128
    %v1131 = vperm.slane %v646, %v886
    %v1132 = vsel %vm888, %v1131, %v1130
    %v1133 = vperm.slane %v649, %v890
    %v1134 = vsel %vm892, %v1133, %v1132
    %v1135 = vperm.slane %v652, %v894
    %v1136 = vsel %vm896, %v1135, %v1134
    %v1137 = vperm.slane %v655, %v898
    %v1138 = vsel %vm900, %v1137, %v1136
    %v1139 = vperm.slane %v658, %v902
    %v1140 = vsel %vm904, %v1139, %v1138
    %v1141 = vperm.slane %v661, %v906
    %v1142 = vsel %vm908, %v1141, %v1140
    %v1143 = vperm.slane %v664, %v910
    %v1144 = vsel %vm912, %v1143, %v1142
    %v1145 = vperm.slane %v667, %v914
    %v1146 = vsel %vm916, %v1145, %v1144
    %v1147 = vperm.slane %v670, %v918
    %v1148 = vsel %vm920, %v1147, %v1146
    %v1149 = vperm.slane %v673, %v922
    %v1150 = vsel %vm924, %v1149, %v1148
    %v1151 = vperm.slane %v676, %v926
    %v1152 = vsel %vm928, %v1151, %v1150
    %v1153 = vperm.slane %v679, %v930
    %v1154 = vsel %vm932, %v1153, %v1152
    %v1155 = vperm.slane %v682, %v934
    %v1156 = vsel %vm936, %v1155, %v1154
    %v1157 = vperm.slane %v685, %v938
    %v1158 = vsel %vm940, %v1157, %v1156
    %vm1159 = vcmask 1041409
    %v1160 = vsel %vm1159, %v1003, %v941
    %vm1161 = vcmask 1042434
    %v1162 = vsel %vm1161, %v1065, %v1160
    %vm1163 = vcmask 1043459
    %v1164 = vsel %vm1163, %v1127, %v1162
    %v1165 = vsel %vm1159, %v1034, %v972
    %v1166 = vsel %vm1161, %v1096, %v1165
    %v1167 = vsel %vm1163, %v1158, %v1166
    %1170 = vmatpush.msra.mxu0 %v734
    %1171 = vmatpush.msra.mxu0 %v733
    %1172 = vmatpush.msra.mxu0 %v732
    %1173 = vmatpush.msra.mxu0 %v731
    %1174 = vmatpush.msra.mxu0 %v730
    %1175 = vmatpush.msra.mxu0 %v729
    %1176 = vmatpush.msra.mxu0 %v728
    %1177 = vmatpush.msra.mxu0 %v727
    %1178 = vmatpush.msra.mxu0 %v726
    %1179 = vmatpush.msra.mxu0 %v725
    %1180 = vmatpush.msra.mxu0 %v724
    %1181 = vmatpush.msra.mxu0 %v723
    %1182 = vmatpush.msra.mxu0 %v722
    %1183 = vmatpush.msra.mxu0 %v721
    %1184 = vmatpush.msra.mxu0 %v720
    %1185 = vmatpush.msra.mxu0 %v719
    %1186 = vmatmul.f32.gmra.mxu0 %v1164
    %v1187 = vpop.f32.mrf.mxu0
    %v1188 = vadd.f32 0.0, %v1187
    %1189 = vdwg.mxu0
    %1190 = vmatpush.msra.mxu0 %v750
    %1191 = vmatpush.msra.mxu0 %v749
    %1192 = vmatpush.msra.mxu0 %v748
    %1193 = vmatpush.msra.mxu0 %v747
    %1194 = vmatpush.msra.mxu0 %v746
    %1195 = vmatpush.msra.mxu0 %v745
    %1196 = vmatpush.msra.mxu0 %v744
    %1197 = vmatpush.msra.mxu0 %v743
    %1198 = vmatpush.msra.mxu0 %v742
    %1199 = vmatpush.msra.mxu0 %v741
    %1200 = vmatpush.msra.mxu0 %v740
    %1201 = vmatpush.msra.mxu0 %v739
    %1202 = vmatpush.msra.mxu0 %v738
    %1203 = vmatpush.msra.mxu0 %v737
    %1204 = vmatpush.msra.mxu0 %v736
    %1205 = vmatpush.msra.mxu0 %v735
    %1206 = vmatmul.f32.gmra.mxu0 %v1167
    %v1207 = vpop.f32.mrf.mxu0
    %v1208 = vadd.f32 %v1188, %v1207
    %1209 = vdwg.mxu0
    %v1210 = vadd.f32 %v686, %v1208
    %vm1211 = vcmask 519168
    %1212 = vst.msk [vmem:[#allocation2] sm:$0xf] %vm1211, %v1210
    // Predicated region
    $region50: #{seresnext_mmc_forward.1} parent=1 // pred_check
      %p1213 = pneg %p39
    $region51: #{seresnext_mmc_forward.1} parent=1 // pred_check_branch
      %1215 = sbr.rel (%p1213) target = $region53
    $region52: #{seresnext_mmc_forward.1} parent=1 // pred_region
      %v1216 = vld [vmem:[%s1] sm:$0xf]
      %v1217 = vld [vmem:[%s2] sm:$0xff]
      %v1218 = vld [vmem:[%s2 + $0x8] sm:$0xff]
      %v1219 = vld [vmem:[%s3] sm:$0x1]
      %v1221 = vperm.slane %v1219, 0
      %vm1223 = vcmask 130048
      %v1225 = vsel %vm1223, %v1216, 0
      %1227 = vmatpush.msra.mxu0 0.0
      %1228 = vmatpush.msra.mxu0 0.0
      %1229 = vmatpush.msra.mxu0 0.0
      %1230 = vmatpush.msra.mxu0 0.0
      %1231 = vmatpush.msra.mxu0 0.0
      %1232 = vmatpush.msra.mxu0 0.0
      %1233 = vmatpush.msra.mxu0 0.0
      %1234 = vmatpush.msra.mxu0 0.0
      %1235 = vmatpush.msra.mxu0 0.0
      %1236 = vmatpush.msra.mxu0 0.0
      %1237 = vmatpush.msra.mxu0 0.0
      %1238 = vmatpush.msra.mxu0 0.0
      %1239 = vmatpush.msra.mxu0 0.0
      %1240 = vmatpush.msra.mxu0 0.0
      %1241 = vmatpush.msra.mxu0 %v1218
      %1242 = vmatpush.msra.mxu0 %v1217
      %1243 = vmatmul.f32.gmra.mxu0 %v1225
      %v1244 = vpop.f32.mrf.mxu0
      %v1245 = vadd.f32 %v1221, %v1244
      %1246 = vdwg.mxu0
      %v1247 = vxor.u32 %v1245, 2147483648
      %v1248 = vmul.f32 %v1247, 1.442695
      %v1249 = vpow.pop %v1248
      %v1250 = vadd.f32 %v1249, 1.0
      %v1251 = vrcp.pop %v1250
      %v1252 = vmul.f32 %v1250, %v1251
      %v1253 = vsub.f32 1.0, %v1252
      %v1254 = vmul.f32 %v1251, %v1253
      %v1255 = vadd.f32 %v1251, %v1254
      %vm1256 = vweird.f32 %v1250
      %vm1257 = vweird.f32 %v1251
      %vm1258 = vmor %vm1256, %vm1257
      %v1259 = vsel %vm1258, %v1251, %v1255
      %v1260 = vand.u32 2147483647, %v1250
      %vm1261 = vcmp.eq.f32.partialorder %v1260, 8.507059e+37
      %v1262 = vand.u32 %v1250, 2147483648
      %v1263 = vor.u32 1.1754944e-38, %v1262
      %v1264 = vsel %vm1261, %v1263, %v1259
      %v1265 = vmul.f32 1.0, %v1264
      %v1266 = vmul.f32 %v1245, %v1265
      %v1267 = vld [vmem:[%s4] sm:$0xff]
      %v1268 = vld [vmem:[%s4 + $0x8] sm:$0xff]
      %v1269 = vld [vmem:[%s4 + $0x10] sm:$0xff]
      %v1270 = vld [vmem:[%s4 + $0x18] sm:$0xff]
      %v1271 = vld [vmem:[%s4 + $0x20] sm:$0xff]
      %v1272 = vld [vmem:[%s4 + $0x28] sm:$0xff]
      %v1273 = vld [vmem:[%s4 + $0x30] sm:$0xff]
      %v1274 = vld [vmem:[%s4 + $0x38] sm:$0xff]
      %v1275 = vld [vmem:[%s5] sm:$0x1]
      %v1277 = vperm.slane %v1275, 0
      %v1280 = vsel %vm301, %v1266, 0
      %1282 = vmatpush.msra.mxu0 0.0
      %1283 = vmatpush.msra.mxu0 0.0
      %1284 = vmatpush.msra.mxu0 0.0
      %1285 = vmatpush.msra.mxu0 0.0
      %1286 = vmatpush.msra.mxu0 0.0
      %1287 = vmatpush.msra.mxu0 0.0
      %1288 = vmatpush.msra.mxu0 0.0
      %1289 = vmatpush.msra.mxu0 0.0
      %1290 = vmatpush.msra.mxu0 %v1274
      %1291 = vmatpush.msra.mxu0 %v1273
      %1292 = vmatpush.msra.mxu0 %v1272
      %1293 = vmatpush.msra.mxu0 %v1271
      %1294 = vmatpush.msra.mxu0 %v1270
      %1295 = vmatpush.msra.mxu0 %v1269
      %1296 = vmatpush.msra.mxu0 %v1268
      %1297 = vmatpush.msra.mxu0 %v1267
      %1298 = vmatmul.f32.gmra.mxu0 %v1280
      %v1299 = vpop.f32.mrf.mxu0
      %v1300 = vadd.f32 %v1277, %v1299
      %1301 = vdwg.mxu0
      %v1302 = vxor.u32 %v1300, 2147483648
      %v1303 = vmul.f32 %v1302, 1.442695
      %v1304 = vpow.pop %v1303
      %v1305 = vadd.f32 %v1304, 1.0
      %v1306 = vrcp.pop %v1305
      %v1307 = vmul.f32 %v1305, %v1306
      %v1308 = vsub.f32 1.0, %v1307
      %v1309 = vmul.f32 %v1306, %v1308
      %v1310 = vadd.f32 %v1306, %v1309
      %vm1311 = vweird.f32 %v1305
      %vm1312 = vweird.f32 %v1306
      %vm1313 = vmor %vm1311, %vm1312
      %v1314 = vsel %vm1313, %v1306, %v1310
      %v1315 = vand.u32 2147483647, %v1305
      %vm1316 = vcmp.eq.f32.partialorder %v1315, 8.507059e+37
      %v1317 = vand.u32 %v1305, 2147483648
      %v1318 = vor.u32 1.1754944e-38, %v1317
      %v1319 = vsel %vm1316, %v1318, %v1314
      %v1320 = vmul.f32 1.0, %v1319
      %v1321 = vmul.f32 %v1300, %v1320
      %v1322 = vld [vmem:[#allocation2] sm:$0xf]
      %v1323 = vmul.f32 %v1322, 0.015625
      %v1324 = vld [vmem:[%s7] sm:$0xff]
      %v1325 = vld [vmem:[%s7 + $0x8] sm:$0xff]
      %v1326 = vld [vmem:[%s7 + $0x10] sm:$0xff]
      %v1327 = vld [vmem:[%s7 + $0x18] sm:$0xff]
      %vm1328 = vcmask 261120
      %v1330 = vsel %vm1328, %v1321, 0
      %1332 = vmatpush.msra.mxu0 0.0
      %1333 = vmatpush.msra.mxu0 0.0
      %1334 = vmatpush.msra.mxu0 0.0
      %1335 = vmatpush.msra.mxu0 0.0
      %1336 = vmatpush.msra.mxu0 0.0
      %1337 = vmatpush.msra.mxu0 0.0
      %1338 = vmatpush.msra.mxu0 0.0
      %1339 = vmatpush.msra.mxu0 0.0
      %1340 = vmatpush.msra.mxu0 0.0
      %1341 = vmatpush.msra.mxu0 0.0
      %1342 = vmatpush.msra.mxu0 0.0
      %1343 = vmatpush.msra.mxu0 0.0
      %1344 = vmatpush.msra.mxu0 %v1327
      %1345 = vmatpush.msra.mxu0 %v1326
      %1346 = vmatpush.msra.mxu0 %v1325
      %1347 = vmatpush.msra.mxu0 %v1324
      %1348 = vmatmul.f32.gmra.mxu0 %v1330
      %v1349 = vpop.f32.mrf.mxu0
      %v1350 = vadd.f32 0.0, %v1349
      %1351 = vdwg.mxu0
      %v1352 = vadd.f32 %v1323, %v1350
      %v1353 = vld [vmem:[%s8] sm:$0x1]
      %v1355 = vperm.slane %v1353, 0
      %v1357 = vadd.f32 %v1352, %v1355
      %v1358 = vxor.u32 %v1357, 2147483648
      %v1359 = vmul.f32 %v1358, 1.442695
      %v1360 = vpow.pop %v1359
      %v1361 = vadd.f32 %v1360, 1.0
      %v1362 = vrcp.pop %v1361
      %v1363 = vmul.f32 %v1361, %v1362
      %v1364 = vsub.f32 1.0, %v1363
      %v1365 = vmul.f32 %v1362, %v1364
      %v1366 = vadd.f32 %v1362, %v1365
      %vm1367 = vweird.f32 %v1361
      %vm1368 = vweird.f32 %v1362
      %vm1369 = vmor %vm1367, %vm1368
      %v1370 = vsel %vm1369, %v1362, %v1366
      %v1371 = vand.u32 2147483647, %v1361
      %vm1372 = vcmp.eq.f32.partialorder %v1371, 8.507059e+37
      %v1373 = vand.u32 %v1361, 2147483648
      %v1374 = vor.u32 1.1754944e-38, %v1373
      %v1375 = vsel %vm1372, %v1374, %v1370
      %v1376 = vmul.f32 1.0, %v1375
      %v1377 = vmul.f32 %v1357, %v1376
      %v1378 = vld [vmem:[%s9] sm:$0xff]
      %v1379 = vld [vmem:[%s9 + $0x8] sm:$0xff]
      %v1380 = vld [vmem:[%s9 + $0x10] sm:$0xff]
      %v1381 = vld [vmem:[%s9 + $0x18] sm:$0xff]
      %v1382 = vld [vmem:[%s9 + $0x20] sm:$0xff]
      %v1383 = vld [vmem:[%s9 + $0x28] sm:$0xff]
      %v1384 = vld [vmem:[%s9 + $0x30] sm:$0xff]
      %v1385 = vld [vmem:[%s9 + $0x38] sm:$0xff]
      %v1386 = vld [vmem:[%s10] sm:$0x1]
      %v1388 = vperm.slane %v1386, 0
      %v1391 = vsel %vm301, %v1377, 0
      %1393 = vmatpush.msra.mxu0 0.0
      %1394 = vmatpush.msra.mxu0 0.0
      %1395 = vmatpush.msra.mxu0 0.0
      %1396 = vmatpush.msra.mxu0 0.0
      %1397 = vmatpush.msra.mxu0 0.0
      %1398 = vmatpush.msra.mxu0 0.0
      %1399 = vmatpush.msra.mxu0 0.0
      %1400 = vmatpush.msra.mxu0 0.0
      %1401 = vmatpush.msra.mxu0 %v1385
      %1402 = vmatpush.msra.mxu0 %v1384
      %1403 = vmatpush.msra.mxu0 %v1383
      %1404 = vmatpush.msra.mxu0 %v1382
      %1405 = vmatpush.msra.mxu0 %v1381
      %1406 = vmatpush.msra.mxu0 %v1380
      %1407 = vmatpush.msra.mxu0 %v1379
      %1408 = vmatpush.msra.mxu0 %v1378
      %1409 = vmatmul.f32.gmra.mxu0 %v1391
      %v1410 = vpop.f32.mrf.mxu0
      %v1411 = vadd.f32 %v1388, %v1410
      %1412 = vdwg.mxu0
      %v1413 = vxor.u32 %v1411, 2147483648
      %v1414 = vmul.f32 %v1413, 1.442695
      %v1415 = vpow.pop %v1414
      %v1416 = vadd.f32 %v1415, 1.0
      %v1417 = vrcp.pop %v1416
      %v1418 = vmul.f32 %v1416, %v1417
      %v1419 = vsub.f32 1.0, %v1418
      %v1420 = vmul.f32 %v1417, %v1419
      %v1421 = vadd.f32 %v1417, %v1420
      %vm1422 = vweird.f32 %v1416
      %vm1423 = vweird.f32 %v1417
      %vm1424 = vmor %vm1422, %vm1423
      %v1425 = vsel %vm1424, %v1417, %v1421
      %v1426 = vand.u32 2147483647, %v1416
      %vm1427 = vcmp.eq.f32.partialorder %v1426, 8.507059e+37
      %v1428 = vand.u32 %v1416, 2147483648
      %v1429 = vor.u32 1.1754944e-38, %v1428
      %v1430 = vsel %vm1427, %v1429, %v1425
      %v1431 = vmul.f32 1.0, %v1430
      %v1432 = vmul.f32 %v1411, %v1431
      %vm1433 = vcmask 257024
      %1434 = vst.msk [vmem:[#allocation3] sm:$0xf] %vm1433, %v1432
    $region53: #{seresnext_mmc_forward.1} parent=1 // pred_fallthru
      _
    // Predicated region
    $region54: #{seresnext_mmc_forward.1} parent=1 // pred_check
      _
    $region55: #{seresnext_mmc_forward.1} parent=1 // pred_check_branch
      %1436 = sbr.rel (0) target = $region57
    $region56: #{seresnext_mmc_forward.1} parent=1 // pred_region
      %1438 = vsyncadd [#allocation4], 0
      %s1440 = sshll.u32 [#allocation3], 4
      %s1441 = int_to_ptr.vmem [resolvable:$true] %s1440
      %s1442 = sshll.u32 %s11, 4
      %s1443 = int_to_ptr.hbm [resolvable:$true] %s1442
      %1445 = dma.vmem_to_hbm [thread:$0]  %s1441, 64, %s1443, [#allocation4]
    $region57: #{seresnext_mmc_forward.1} parent=1 // pred_fallthru
      _
    // Predicated region
    $region58: #{seresnext_mmc_forward.1} parent=1 // pred_check
      _
    $region59: #{seresnext_mmc_forward.1} parent=1 // pred_check_branch
      %1447 = sbr.rel (0) target = $region61
    $region60: #{seresnext_mmc_forward.1} parent=1 // pred_region
      %1449 = dma.done [#allocation4], 64
    $region61: #{seresnext_mmc_forward.1} parent=1 // pred_fallthru
      _
    %1450 = vsyncpa [#allocation4], 1

</llo_original>
